<compile_context>
chip_gen: v7x
topology: tpu7x:2x2x1
jax: 0.10.0
libtpu: 0.0.40
codegen_flags: <defaults>
</compile_context>

<pallas_src>
import functools

import jax
import jax.numpy as jnp
from jax.experimental import pallas as pl
from jax.experimental.pallas import tpu as pltpu


# ----------------------------- Pallas kernel ------------------------------- #

def _dwconv_bn_relu_kernel(x_ref, w_ref, g_ref, b_ref, o_ref, *,
                           kh, kw, stride, ho, wo, cb, eps, inv_count):
    """One grid step = one block of `cb` output channels, full batch + spatial.

    x_ref : VMEM (cb, N, Hp, Wp)   padded input plane per output channel
    w_ref : SMEM (Cout, kh*kw)     depthwise filter taps
    g_ref : SMEM (Cout,)           BN gamma
    b_ref : SMEM (Cout,)           BN beta
    o_ref : VMEM (cb, N, Ho, Wo)   output block
    """
    c0 = pl.program_id(0) * cb
    for cl in range(cb):                      # static unroll over the channel block
        xc = x_ref[cl]                        # (N, Hp, Wp)

        # depthwise 3x3: sum of kh*kw shifted windows, accumulated in VMEM/f32.
        # (stride > 1 uses a strided value slice; the demo exercises stride=1.)
        acc = None
        for i in range(kh):
            for j in range(kw):
                win = xc[:, i:i + (ho - 1) * stride + 1:stride,
                            j:j + (wo - 1) * stride + 1:stride]
                tap = w_ref[c0 + cl, i * kw + j] * win
                acc = tap if acc is None else acc + tap

        # BatchNorm (training-mode batch stats, biased variance) + ReLU, fused
        # on the in-VMEM conv result.  Centered two-pass variance -> no
        # E[x^2]-E[x]^2 cancellation.
        mean = jnp.sum(acc) * inv_count
        cen = acc - mean
        var = jnp.sum(cen * cen) * inv_count
        scale = g_ref[c0 + cl] * jax.lax.rsqrt(var + eps)
        o_ref[cl] = jnp.maximum(cen * scale + b_ref[c0 + cl], 0.0).astype(o_ref.dtype)


# -------------------------------- wrapper ---------------------------------- #

def dwconv_bn_relu(x, weight, gamma, beta, *, stride=1, padding=1,
                   eps=1e-5, c_block=8):
    N, Cin, H, W = x.shape
    Cout, w_in, kh, kw = weight.shape
    assert w_in == 1 and Cout % Cin == 0, "depthwise conv: groups == dw_channels"
    mult = Cout // Cin

    Hp, Wp = H + 2 * padding, W + 2 * padding
    Ho = (Hp - kh) // stride + 1
    Wo = (Wp - kw) // stride + 1

    # Channel-major padded input with one plane per OUTPUT channel.
    # jnp.repeat is the identity when out_channels == dw_channels; otherwise it
    # replicates each input plane `mult` times, matching PyTorch grouping where
    # output channel c reads input channel c // mult.
    xp = jnp.pad(x.astype(jnp.float32),
                 ((0, 0), (0, 0), (padding, padding), (padding, padding)))
    x_cm = jnp.transpose(xp, (1, 0, 2, 3))                      # (Cin, N, Hp, Wp)
    if mult > 1:
        x_cm = jnp.repeat(x_cm, mult, axis=0)                   # (Cout, N, Hp, Wp)

    w_tap = weight.astype(jnp.float32).reshape(Cout, kh * kw)   # SMEM scalar table
    g = gamma.astype(jnp.float32)
    b = beta.astype(jnp.float32)

    # Channel-block size: largest divisor of Cout not exceeding c_block.
    cb = max(d for d in range(1, min(c_block, Cout) + 1) if Cout % d == 0)
    grid = (Cout // cb,)

    kernel = functools.partial(
        _dwconv_bn_relu_kernel, kh=kh, kw=kw, stride=stride,
        ho=Ho, wo=Wo, cb=cb, eps=float(eps),
        inv_count=1.0 / float(N * Ho * Wo))

    out_cm = pl.pallas_call(
        kernel,
        out_shape=jax.ShapeDtypeStruct((Cout, N, Ho, Wo), jnp.float32),
        grid_spec=pltpu.PrefetchScalarGridSpec(
            num_scalar_prefetch=0,
            grid=grid,
            in_specs=[
                pl.BlockSpec((cb, N, Hp, Wp), lambda c: (c, 0, 0, 0)),
                pl.BlockSpec(memory_space=pltpu.MemorySpace.SMEM),
                pl.BlockSpec(memory_space=pltpu.MemorySpace.SMEM),
                pl.BlockSpec(memory_space=pltpu.MemorySpace.SMEM),
            ],
            out_specs=pl.BlockSpec((cb, N, Ho, Wo), lambda c: (c, 0, 0, 0)),
        ),
        compiler_params=pltpu.CompilerParams(
            dimension_semantics=("parallel",),      # channel blocks are independent
            vmem_limit_bytes=32 * 1024 * 1024,      # safe on v5e/v6e/v7x
        ),
    )(x_cm, w_tap, g, b)

    return jnp.transpose(out_cm, (1, 0, 2, 3))                  # back to NCHW


# ------------------------- pure-JAX reference check ------------------------ #

def ref_dwconv_bn_relu(x, weight, gamma, beta, *, stride, padding, eps=1e-5):
    Cin = x.shape[1]
    y = jax.lax.conv_general_dilated(
        x, weight, (stride, stride),
        [(padding, padding), (padding, padding)],
        dimension_numbers=("NCHW", "OIHW", "NCHW"),
        feature_group_count=Cin)                    # depthwise, bias=False
    mean = y.mean(axis=(0, 2, 3), keepdims=True)
    var = y.var(axis=(0, 2, 3), keepdims=True)      # biased, like BN training
    yn = (y - mean) / jnp.sqrt(var + eps)
    yn = yn * gamma[None, :, None, None] + beta[None, :, None, None]
    return jnp.maximum(yn, 0.0)


# ----------------------------------- main ----------------------------------- #

if __name__ == "__main__":
    # DWConv(dw_channels=4, out_channels=8, stride=1)
    N, Cin, H, W = 2, 4, 16, 16
    Cout, kh, kw = 8, 3, 3          # out_channels must be a multiple of dw_channels
    stride, padding = 1, 1

    key = jax.random.PRNGKey(0)
    kx, kwgt = jax.random.split(key, 2)

    x = jax.random.normal(kx, (N, Cin, H, W), dtype=jnp.float32)
    fan_in = 1 * kh * kw                            # depthwise: Cin/groups == 1
    bound = 1.0 / (fan_in ** 0.5)
    weight = jax.random.uniform(kwgt, (Cout, 1, kh, kw), jnp.float32, -bound, bound)
    gamma = jnp.ones((Cout,), jnp.float32)          # nn.BatchNorm2d default weight
    beta = jnp.zeros((Cout,), jnp.float32)          # nn.BatchNorm2d default bias

    out = dwconv_bn_relu(x, weight, gamma, beta, stride=stride, padding=padding,
                         c_block=4)                 # grid of 2 channel blocks
    out = jax.block_until_ready(out)

    ref = ref_dwconv_bn_relu(x, weight, gamma, beta, stride=stride, padding=padding)
    assert out.shape == (N, Cout, H, W)
    assert jnp.allclose(out, ref, atol=1e-4, rtol=1e-4), "mismatch vs JAX reference"

    print("KERNEL_OK")
</pallas_src>

<mosaic_0001>
module attributes {stable_mosaic.version = 11 : i64} {
  func.func @_dwconv_bn_relu_kernel(%arg0: i32, %arg1: memref<4x2x18x18xf32, #tpu.memory_space<vmem>>, %arg2: memref<8x9xf32, #tpu.memory_space<smem>>, %arg3: memref<8xf32, #tpu.memory_space<smem>>, %arg4: memref<8xf32, #tpu.memory_space<smem>>, %arg5: memref<4x2x16x16xf32, #tpu.memory_space<vmem>>) attributes {dimension_semantics = [#tpu.dimension_semantics<parallel>], iteration_bounds = array<i64: 2>, scalar_prefetch = 0 : i64, scratch_operands = 0 : i64, tpu.core_type = #tpu.core_type<tc>, window_params = [{transform_indices = @transform_0, window_bounds = array<i64: 4, 2, 18, 18>}, {transform_indices = @transform_1, window_bounds = array<i64: 8, 9>}, {transform_indices = @transform_2, window_bounds = array<i64: 8>}, {transform_indices = @transform_3, window_bounds = array<i64: 8>}, {transform_indices = @transform_4, window_bounds = array<i64: 4, 2, 16, 16>}]} {
    %c4_i32 = arith.constant 4 : i32
    %0 = arith.muli %arg0, %c4_i32 : i32
    %c0 = arith.constant 0 : index
    %c0_0 = arith.constant 0 : index
    %c0_1 = arith.constant 0 : index
    %c0_2 = arith.constant 0 : index
    %1 = vector.load %arg1[%c0, %c0_0, %c0_1, %c0_2] : memref<4x2x18x18xf32, #tpu.memory_space<vmem>>, vector<1x2x18x18xf32>
    %2 = vector.shape_cast %1 : vector<1x2x18x18xf32> to vector<2x18x18xf32>
    %3 = vector.extract_strided_slice %2 {offsets = [0, 0, 0], sizes = [2, 16, 16], strides = [1, 1, 1]} : vector<2x18x18xf32> to vector<2x16x16xf32>
    %c0_i32 = arith.constant 0 : i32
    %4 = arith.addi %0, %c0_i32 : i32
    %5 = arith.index_cast %4 : i32 to index
    %c0_3 = arith.constant 0 : index
    %6 = memref.load %arg2[%5, %c0_3] : memref<8x9xf32, #tpu.memory_space<smem>>
    %7 = vector.broadcast %6 : f32 to vector<2x16x16xf32>
    %8 = arith.mulf %7, %3 : vector<2x16x16xf32>
    %9 = vector.extract_strided_slice %2 {offsets = [0, 0, 1], sizes = [2, 16, 16], strides = [1, 1, 1]} : vector<2x18x18xf32> to vector<2x16x16xf32>
    %c0_i32_4 = arith.constant 0 : i32
    %10 = arith.addi %0, %c0_i32_4 : i32
    %11 = arith.index_cast %10 : i32 to index
    %c1 = arith.constant 1 : index
    %12 = memref.load %arg2[%11, %c1] : memref<8x9xf32, #tpu.memory_space<smem>>
    %13 = vector.broadcast %12 : f32 to vector<2x16x16xf32>
    %14 = arith.mulf %13, %9 : vector<2x16x16xf32>
    %15 = arith.addf %8, %14 : vector<2x16x16xf32>
    %16 = vector.extract_strided_slice %2 {offsets = [0, 0, 2], sizes = [2, 16, 16], strides = [1, 1, 1]} : vector<2x18x18xf32> to vector<2x16x16xf32>
    %c0_i32_5 = arith.constant 0 : i32
    %17 = arith.addi %0, %c0_i32_5 : i32
    %18 = arith.index_cast %17 : i32 to index
    %c2 = arith.constant 2 : index
    %19 = memref.load %arg2[%18, %c2] : memref<8x9xf32, #tpu.memory_space<smem>>
    %20 = vector.broadcast %19 : f32 to vector<2x16x16xf32>
    %21 = arith.mulf %20, %16 : vector<2x16x16xf32>
    %22 = arith.addf %15, %21 : vector<2x16x16xf32>
    %23 = vector.extract_strided_slice %2 {offsets = [0, 1, 0], sizes = [2, 16, 16], strides = [1, 1, 1]} : vector<2x18x18xf32> to vector<2x16x16xf32>
    %c0_i32_6 = arith.constant 0 : i32
    %24 = arith.addi %0, %c0_i32_6 : i32
    %25 = arith.index_cast %24 : i32 to index
    %c3 = arith.constant 3 : index
    %26 = memref.load %arg2[%25, %c3] : memref<8x9xf32, #tpu.memory_space<smem>>
    %27 = vector.broadcast %26 : f32 to vector<2x16x16xf32>
    %28 = arith.mulf %27, %23 : vector<2x16x16xf32>
    %29 = arith.addf %22, %28 : vector<2x16x16xf32>
    %30 = vector.extract_strided_slice %2 {offsets = [0, 1, 1], sizes = [2, 16, 16], strides = [1, 1, 1]} : vector<2x18x18xf32> to vector<2x16x16xf32>
    %c0_i32_7 = arith.constant 0 : i32
    %31 = arith.addi %0, %c0_i32_7 : i32
    %32 = arith.index_cast %31 : i32 to index
    %c4 = arith.constant 4 : index
    %33 = memref.load %arg2[%32, %c4] : memref<8x9xf32, #tpu.memory_space<smem>>
    %34 = vector.broadcast %33 : f32 to vector<2x16x16xf32>
    %35 = arith.mulf %34, %30 : vector<2x16x16xf32>
    %36 = arith.addf %29, %35 : vector<2x16x16xf32>
    %37 = vector.extract_strided_slice %2 {offsets = [0, 1, 2], sizes = [2, 16, 16], strides = [1, 1, 1]} : vector<2x18x18xf32> to vector<2x16x16xf32>
    %c0_i32_8 = arith.constant 0 : i32
    %38 = arith.addi %0, %c0_i32_8 : i32
    %39 = arith.index_cast %38 : i32 to index
    %c5 = arith.constant 5 : index
    %40 = memref.load %arg2[%39, %c5] : memref<8x9xf32, #tpu.memory_space<smem>>
    %41 = vector.broadcast %40 : f32 to vector<2x16x16xf32>
    %42 = arith.mulf %41, %37 : vector<2x16x16xf32>
    %43 = arith.addf %36, %42 : vector<2x16x16xf32>
    %44 = vector.extract_strided_slice %2 {offsets = [0, 2, 0], sizes = [2, 16, 16], strides = [1, 1, 1]} : vector<2x18x18xf32> to vector<2x16x16xf32>
    %c0_i32_9 = arith.constant 0 : i32
    %45 = arith.addi %0, %c0_i32_9 : i32
    %46 = arith.index_cast %45 : i32 to index
    %c6 = arith.constant 6 : index
    %47 = memref.load %arg2[%46, %c6] : memref<8x9xf32, #tpu.memory_space<smem>>
    %48 = vector.broadcast %47 : f32 to vector<2x16x16xf32>
    %49 = arith.mulf %48, %44 : vector<2x16x16xf32>
    %50 = arith.addf %43, %49 : vector<2x16x16xf32>
    %51 = vector.extract_strided_slice %2 {offsets = [0, 2, 1], sizes = [2, 16, 16], strides = [1, 1, 1]} : vector<2x18x18xf32> to vector<2x16x16xf32>
    %c0_i32_10 = arith.constant 0 : i32
    %52 = arith.addi %0, %c0_i32_10 : i32
    %53 = arith.index_cast %52 : i32 to index
    %c7 = arith.constant 7 : index
    %54 = memref.load %arg2[%53, %c7] : memref<8x9xf32, #tpu.memory_space<smem>>
    %55 = vector.broadcast %54 : f32 to vector<2x16x16xf32>
    %56 = arith.mulf %55, %51 : vector<2x16x16xf32>
    %57 = arith.addf %50, %56 : vector<2x16x16xf32>
    %58 = vector.extract_strided_slice %2 {offsets = [0, 2, 2], sizes = [2, 16, 16], strides = [1, 1, 1]} : vector<2x18x18xf32> to vector<2x16x16xf32>
    %c0_i32_11 = arith.constant 0 : i32
    %59 = arith.addi %0, %c0_i32_11 : i32
    %60 = arith.index_cast %59 : i32 to index
    %c8 = arith.constant 8 : index
    %61 = memref.load %arg2[%60, %c8] : memref<8x9xf32, #tpu.memory_space<smem>>
    %62 = vector.broadcast %61 : f32 to vector<2x16x16xf32>
    %63 = arith.mulf %62, %58 : vector<2x16x16xf32>
    %64 = arith.addf %57, %63 : vector<2x16x16xf32>
    %65 = vector.shape_cast %64 : vector<2x16x16xf32> to vector<1x2x16x16xf32>
    %cst = arith.constant dense<0.000000e+00> : vector<1xf32>
    %66 = vector.multi_reduction <add>, %65, %cst [1, 2, 3] : vector<1x2x16x16xf32> to vector<1xf32>
    %67 = vector.shape_cast %66 : vector<1xf32> to vector<1x1x1x1xf32>
    %68 = vector.extract %67[0, 0, 0, 0] : f32 from vector<1x1x1x1xf32>
    %cst_12 = arith.constant 0.001953125 : f32
    %69 = arith.mulf %68, %cst_12 : f32
    %70 = vector.broadcast %69 : f32 to vector<2x16x16xf32>
    %71 = arith.subf %64, %70 : vector<2x16x16xf32>
    %72 = arith.mulf %71, %71 : vector<2x16x16xf32>
    %73 = vector.shape_cast %72 : vector<2x16x16xf32> to vector<1x2x16x16xf32>
    %cst_13 = arith.constant dense<0.000000e+00> : vector<1xf32>
    %74 = vector.multi_reduction <add>, %73, %cst_13 [1, 2, 3] : vector<1x2x16x16xf32> to vector<1xf32>
    %75 = vector.shape_cast %74 : vector<1xf32> to vector<1x1x1x1xf32>
    %76 = vector.extract %75[0, 0, 0, 0] : f32 from vector<1x1x1x1xf32>
    %cst_14 = arith.constant 0.001953125 : f32
    %77 = arith.mulf %76, %cst_14 : f32
    %c0_i32_15 = arith.constant 0 : i32
    %78 = arith.addi %0, %c0_i32_15 : i32
    %79 = arith.index_cast %78 : i32 to index
    %80 = memref.load %arg3[%79] : memref<8xf32, #tpu.memory_space<smem>>
    %cst_16 = arith.constant 9.99999974E-6 : f32
    %81 = arith.addf %77, %cst_16 : f32
    %82 = math.rsqrt %81 : f32
    %83 = arith.mulf %80, %82 : f32
    %84 = vector.broadcast %83 : f32 to vector<2x16x16xf32>
    %85 = arith.mulf %71, %84 : vector<2x16x16xf32>
    %c0_i32_17 = arith.constant 0 : i32
    %86 = arith.addi %0, %c0_i32_17 : i32
    %87 = arith.index_cast %86 : i32 to index
    %88 = memref.load %arg4[%87] : memref<8xf32, #tpu.memory_space<smem>>
    %89 = vector.broadcast %88 : f32 to vector<2x16x16xf32>
    %90 = arith.addf %85, %89 : vector<2x16x16xf32>
    %cst_18 = arith.constant 0.000000e+00 : f32
    %91 = vector.broadcast %cst_18 : f32 to vector<2x16x16xf32>
    %92 = arith.maximumf %90, %91 : vector<2x16x16xf32>
    %c0_19 = arith.constant 0 : index
    %c0_20 = arith.constant 0 : index
    %c0_21 = arith.constant 0 : index
    %c0_22 = arith.constant 0 : index
    %93 = vector.load %arg5[%c0_19, %c0_20, %c0_21, %c0_22] : memref<4x2x16x16xf32, #tpu.memory_space<vmem>>, vector<1x2x16x16xf32>
    %94 = vector.shape_cast %93 : vector<1x2x16x16xf32> to vector<2x16x16xf32>
    %95 = vector.shape_cast %92 : vector<2x16x16xf32> to vector<1x2x16x16xf32>
    tpu.vector_store %arg5[%c0_19, %c0_20, %c0_21, %c0_22], %95 {strides = array<i32>} : memref<4x2x16x16xf32, #tpu.memory_space<vmem>>, vector<1x2x16x16xf32>,
    %c1_23 = arith.constant 1 : index
    %c0_24 = arith.constant 0 : index
    %c0_25 = arith.constant 0 : index
    %c0_26 = arith.constant 0 : index
    %96 = vector.load %arg1[%c1_23, %c0_24, %c0_25, %c0_26] : memref<4x2x18x18xf32, #tpu.memory_space<vmem>>, vector<1x2x18x18xf32>
    %97 = vector.shape_cast %96 : vector<1x2x18x18xf32> to vector<2x18x18xf32>
    %98 = vector.extract_strided_slice %97 {offsets = [0, 0, 0], sizes = [2, 16, 16], strides = [1, 1, 1]} : vector<2x18x18xf32> to vector<2x16x16xf32>
    %c1_i32 = arith.constant 1 : i32
    %99 = arith.addi %0, %c1_i32 : i32
    %100 = arith.index_cast %99 : i32 to index
    %c0_27 = arith.constant 0 : index
    %101 = memref.load %arg2[%100, %c0_27] : memref<8x9xf32, #tpu.memory_space<smem>>
    %102 = vector.broadcast %101 : f32 to vector<2x16x16xf32>
    %103 = arith.mulf %102, %98 : vector<2x16x16xf32>
    %104 = vector.extract_strided_slice %97 {offsets = [0, 0, 1], sizes = [2, 16, 16], strides = [1, 1, 1]} : vector<2x18x18xf32> to vector<2x16x16xf32>
    %c1_i32_28 = arith.constant 1 : i32
    %105 = arith.addi %0, %c1_i32_28 : i32
    %106 = arith.index_cast %105 : i32 to index
    %c1_29 = arith.constant 1 : index
    %107 = memref.load %arg2[%106, %c1_29] : memref<8x9xf32, #tpu.memory_space<smem>>
    %108 = vector.broadcast %107 : f32 to vector<2x16x16xf32>
    %109 = arith.mulf %108, %104 : vector<2x16x16xf32>
    %110 = arith.addf %103, %109 : vector<2x16x16xf32>
    %111 = vector.extract_strided_slice %97 {offsets = [0, 0, 2], sizes = [2, 16, 16], strides = [1, 1, 1]} : vector<2x18x18xf32> to vector<2x16x16xf32>
    %c1_i32_30 = arith.constant 1 : i32
    %112 = arith.addi %0, %c1_i32_30 : i32
    %113 = arith.index_cast %112 : i32 to index
    %c2_31 = arith.constant 2 : index
    %114 = memref.load %arg2[%113, %c2_31] : memref<8x9xf32, #tpu.memory_space<smem>>
    %115 = vector.broadcast %114 : f32 to vector<2x16x16xf32>
    %116 = arith.mulf %115, %111 : vector<2x16x16xf32>
    %117 = arith.addf %110, %116 : vector<2x16x16xf32>
    %118 = vector.extract_strided_slice %97 {offsets = [0, 1, 0], sizes = [2, 16, 16], strides = [1, 1, 1]} : vector<2x18x18xf32> to vector<2x16x16xf32>
    %c1_i32_32 = arith.constant 1 : i32
    %119 = arith.addi %0, %c1_i32_32 : i32
    %120 = arith.index_cast %119 : i32 to index
    %c3_33 = arith.constant 3 : index
    %121 = memref.load %arg2[%120, %c3_33] : memref<8x9xf32, #tpu.memory_space<smem>>
    %122 = vector.broadcast %121 : f32 to vector<2x16x16xf32>
    %123 = arith.mulf %122, %118 : vector<2x16x16xf32>
    %124 = arith.addf %117, %123 : vector<2x16x16xf32>
    %125 = vector.extract_strided_slice %97 {offsets = [0, 1, 1], sizes = [2, 16, 16], strides = [1, 1, 1]} : vector<2x18x18xf32> to vector<2x16x16xf32>
    %c1_i32_34 = arith.constant 1 : i32
    %126 = arith.addi %0, %c1_i32_34 : i32
    %127 = arith.index_cast %126 : i32 to index
    %c4_35 = arith.constant 4 : index
    %128 = memref.load %arg2[%127, %c4_35] : memref<8x9xf32, #tpu.memory_space<smem>>
    %129 = vector.broadcast %128 : f32 to vector<2x16x16xf32>
    %130 = arith.mulf %129, %125 : vector<2x16x16xf32>
    %131 = arith.addf %124, %130 : vector<2x16x16xf32>
    %132 = vector.extract_strided_slice %97 {offsets = [0, 1, 2], sizes = [2, 16, 16], strides = [1, 1, 1]} : vector<2x18x18xf32> to vector<2x16x16xf32>
    %c1_i32_36 = arith.constant 1 : i32
    %133 = arith.addi %0, %c1_i32_36 : i32
    %134 = arith.index_cast %133 : i32 to index
    %c5_37 = arith.constant 5 : index
    %135 = memref.load %arg2[%134, %c5_37] : memref<8x9xf32, #tpu.memory_space<smem>>
    %136 = vector.broadcast %135 : f32 to vector<2x16x16xf32>
    %137 = arith.mulf %136, %132 : vector<2x16x16xf32>
    %138 = arith.addf %131, %137 : vector<2x16x16xf32>
    %139 = vector.extract_strided_slice %97 {offsets = [0, 2, 0], sizes = [2, 16, 16], strides = [1, 1, 1]} : vector<2x18x18xf32> to vector<2x16x16xf32>
    %c1_i32_38 = arith.constant 1 : i32
    %140 = arith.addi %0, %c1_i32_38 : i32
    %141 = arith.index_cast %140 : i32 to index
    %c6_39 = arith.constant 6 : index
    %142 = memref.load %arg2[%141, %c6_39] : memref<8x9xf32, #tpu.memory_space<smem>>
    %143 = vector.broadcast %142 : f32 to vector<2x16x16xf32>
    %144 = arith.mulf %143, %139 : vector<2x16x16xf32>
    %145 = arith.addf %138, %144 : vector<2x16x16xf32>
    %146 = vector.extract_strided_slice %97 {offsets = [0, 2, 1], sizes = [2, 16, 16], strides = [1, 1, 1]} : vector<2x18x18xf32> to vector<2x16x16xf32>
    %c1_i32_40 = arith.constant 1 : i32
    %147 = arith.addi %0, %c1_i32_40 : i32
    %148 = arith.index_cast %147 : i32 to index
    %c7_41 = arith.constant 7 : index
    %149 = memref.load %arg2[%148, %c7_41] : memref<8x9xf32, #tpu.memory_space<smem>>
    %150 = vector.broadcast %149 : f32 to vector<2x16x16xf32>
    %151 = arith.mulf %150, %146 : vector<2x16x16xf32>
    %152 = arith.addf %145, %151 : vector<2x16x16xf32>
    %153 = vector.extract_strided_slice %97 {offsets = [0, 2, 2], sizes = [2, 16, 16], strides = [1, 1, 1]} : vector<2x18x18xf32> to vector<2x16x16xf32>
    %c1_i32_42 = arith.constant 1 : i32
    %154 = arith.addi %0, %c1_i32_42 : i32
    %155 = arith.index_cast %154 : i32 to index
    %c8_43 = arith.constant 8 : index
    %156 = memref.load %arg2[%155, %c8_43] : memref<8x9xf32, #tpu.memory_space<smem>>
    %157 = vector.broadcast %156 : f32 to vector<2x16x16xf32>
    %158 = arith.mulf %157, %153 : vector<2x16x16xf32>
    %159 = arith.addf %152, %158 : vector<2x16x16xf32>
    %160 = vector.shape_cast %159 : vector<2x16x16xf32> to vector<1x2x16x16xf32>
    %cst_44 = arith.constant dense<0.000000e+00> : vector<1xf32>
    %161 = vector.multi_reduction <add>, %160, %cst_44 [1, 2, 3] : vector<1x2x16x16xf32> to vector<1xf32>
    %162 = vector.shape_cast %161 : vector<1xf32> to vector<1x1x1x1xf32>
    %163 = vector.extract %162[0, 0, 0, 0] : f32 from vector<1x1x1x1xf32>
    %cst_45 = arith.constant 0.001953125 : f32
    %164 = arith.mulf %163, %cst_45 : f32
    %165 = vector.broadcast %164 : f32 to vector<2x16x16xf32>
    %166 = arith.subf %159, %165 : vector<2x16x16xf32>
    %167 = arith.mulf %166, %166 : vector<2x16x16xf32>
    %168 = vector.shape_cast %167 : vector<2x16x16xf32> to vector<1x2x16x16xf32>
    %cst_46 = arith.constant dense<0.000000e+00> : vector<1xf32>
    %169 = vector.multi_reduction <add>, %168, %cst_46 [1, 2, 3] : vector<1x2x16x16xf32> to vector<1xf32>
    %170 = vector.shape_cast %169 : vector<1xf32> to vector<1x1x1x1xf32>
    %171 = vector.extract %170[0, 0, 0, 0] : f32 from vector<1x1x1x1xf32>
    %cst_47 = arith.constant 0.001953125 : f32
    %172 = arith.mulf %171, %cst_47 : f32
    %c1_i32_48 = arith.constant 1 : i32
    %173 = arith.addi %0, %c1_i32_48 : i32
    %174 = arith.index_cast %173 : i32 to index
    %175 = memref.load %arg3[%174] : memref<8xf32, #tpu.memory_space<smem>>
    %cst_49 = arith.constant 9.99999974E-6 : f32
    %176 = arith.addf %172, %cst_49 : f32
    %177 = math.rsqrt %176 : f32
    %178 = arith.mulf %175, %177 : f32
    %179 = vector.broadcast %178 : f32 to vector<2x16x16xf32>
    %180 = arith.mulf %166, %179 : vector<2x16x16xf32>
    %c1_i32_50 = arith.constant 1 : i32
    %181 = arith.addi %0, %c1_i32_50 : i32
    %182 = arith.index_cast %181 : i32 to index
    %183 = memref.load %arg4[%182] : memref<8xf32, #tpu.memory_space<smem>>
    %184 = vector.broadcast %183 : f32 to vector<2x16x16xf32>
    %185 = arith.addf %180, %184 : vector<2x16x16xf32>
    %cst_51 = arith.constant 0.000000e+00 : f32
    %186 = vector.broadcast %cst_51 : f32 to vector<2x16x16xf32>
    %187 = arith.maximumf %185, %186 : vector<2x16x16xf32>
    %c1_52 = arith.constant 1 : index
    %c0_53 = arith.constant 0 : index
    %c0_54 = arith.constant 0 : index
    %c0_55 = arith.constant 0 : index
    %188 = vector.load %arg5[%c1_52, %c0_53, %c0_54, %c0_55] : memref<4x2x16x16xf32, #tpu.memory_space<vmem>>, vector<1x2x16x16xf32>
    %189 = vector.shape_cast %188 : vector<1x2x16x16xf32> to vector<2x16x16xf32>
    %190 = vector.shape_cast %187 : vector<2x16x16xf32> to vector<1x2x16x16xf32>
    tpu.vector_store %arg5[%c1_52, %c0_53, %c0_54, %c0_55], %190 {strides = array<i32>} : memref<4x2x16x16xf32, #tpu.memory_space<vmem>>, vector<1x2x16x16xf32>,
    %c2_56 = arith.constant 2 : index
    %c0_57 = arith.constant 0 : index
    %c0_58 = arith.constant 0 : index
    %c0_59 = arith.constant 0 : index
    %191 = vector.load %arg1[%c2_56, %c0_57, %c0_58, %c0_59] : memref<4x2x18x18xf32, #tpu.memory_space<vmem>>, vector<1x2x18x18xf32>
    %192 = vector.shape_cast %191 : vector<1x2x18x18xf32> to vector<2x18x18xf32>
    %193 = vector.extract_strided_slice %192 {offsets = [0, 0, 0], sizes = [2, 16, 16], strides = [1, 1, 1]} : vector<2x18x18xf32> to vector<2x16x16xf32>
    %c2_i32 = arith.constant 2 : i32
    %194 = arith.addi %0, %c2_i32 : i32
    %195 = arith.index_cast %194 : i32 to index
    %c0_60 = arith.constant 0 : index
    %196 = memref.load %arg2[%195, %c0_60] : memref<8x9xf32, #tpu.memory_space<smem>>
    %197 = vector.broadcast %196 : f32 to vector<2x16x16xf32>
    %198 = arith.mulf %197, %193 : vector<2x16x16xf32>
    %199 = vector.extract_strided_slice %192 {offsets = [0, 0, 1], sizes = [2, 16, 16], strides = [1, 1, 1]} : vector<2x18x18xf32> to vector<2x16x16xf32>
    %c2_i32_61 = arith.constant 2 : i32
    %200 = arith.addi %0, %c2_i32_61 : i32
    %201 = arith.index_cast %200 : i32 to index
    %c1_62 = arith.constant 1 : index
    %202 = memref.load %arg2[%201, %c1_62] : memref<8x9xf32, #tpu.memory_space<smem>>
    %203 = vector.broadcast %202 : f32 to vector<2x16x16xf32>
    %204 = arith.mulf %203, %199 : vector<2x16x16xf32>
    %205 = arith.addf %198, %204 : vector<2x16x16xf32>
    %206 = vector.extract_strided_slice %192 {offsets = [0, 0, 2], sizes = [2, 16, 16], strides = [1, 1, 1]} : vector<2x18x18xf32> to vector<2x16x16xf32>
    %c2_i32_63 = arith.constant 2 : i32
    %207 = arith.addi %0, %c2_i32_63 : i32
    %208 = arith.index_cast %207 : i32 to index
    %c2_64 = arith.constant 2 : index
    %209 = memref.load %arg2[%208, %c2_64] : memref<8x9xf32, #tpu.memory_space<smem>>
    %210 = vector.broadcast %209 : f32 to vector<2x16x16xf32>
    %211 = arith.mulf %210, %206 : vector<2x16x16xf32>
    %212 = arith.addf %205, %211 : vector<2x16x16xf32>
    %213 = vector.extract_strided_slice %192 {offsets = [0, 1, 0], sizes = [2, 16, 16], strides = [1, 1, 1]} : vector<2x18x18xf32> to vector<2x16x16xf32>
    %c2_i32_65 = arith.constant 2 : i32
    %214 = arith.addi %0, %c2_i32_65 : i32
    %215 = arith.index_cast %214 : i32 to index
    %c3_66 = arith.constant 3 : index
    %216 = memref.load %arg2[%215, %c3_66] : memref<8x9xf32, #tpu.memory_space<smem>>
    %217 = vector.broadcast %216 : f32 to vector<2x16x16xf32>
    %218 = arith.mulf %217, %213 : vector<2x16x16xf32>
    %219 = arith.addf %212, %218 : vector<2x16x16xf32>
    %220 = vector.extract_strided_slice %192 {offsets = [0, 1, 1], sizes = [2, 16, 16], strides = [1, 1, 1]} : vector<2x18x18xf32> to vector<2x16x16xf32>
    %c2_i32_67 = arith.constant 2 : i32
    %221 = arith.addi %0, %c2_i32_67 : i32
    %222 = arith.index_cast %221 : i32 to index
    %c4_68 = arith.constant 4 : index
    %223 = memref.load %arg2[%222, %c4_68] : memref<8x9xf32, #tpu.memory_space<smem>>
    %224 = vector.broadcast %223 : f32 to vector<2x16x16xf32>
    %225 = arith.mulf %224, %220 : vector<2x16x16xf32>
    %226 = arith.addf %219, %225 : vector<2x16x16xf32>
    %227 = vector.extract_strided_slice %192 {offsets = [0, 1, 2], sizes = [2, 16, 16], strides = [1, 1, 1]} : vector<2x18x18xf32> to vector<2x16x16xf32>
    %c2_i32_69 = arith.constant 2 : i32
    %228 = arith.addi %0, %c2_i32_69 : i32
    %229 = arith.index_cast %228 : i32 to index
    %c5_70 = arith.constant 5 : index
    %230 = memref.load %arg2[%229, %c5_70] : memref<8x9xf32, #tpu.memory_space<smem>>
    %231 = vector.broadcast %230 : f32 to vector<2x16x16xf32>
    %232 = arith.mulf %231, %227 : vector<2x16x16xf32>
    %233 = arith.addf %226, %232 : vector<2x16x16xf32>
    %234 = vector.extract_strided_slice %192 {offsets = [0, 2, 0], sizes = [2, 16, 16], strides = [1, 1, 1]} : vector<2x18x18xf32> to vector<2x16x16xf32>
    %c2_i32_71 = arith.constant 2 : i32
    %235 = arith.addi %0, %c2_i32_71 : i32
    %236 = arith.index_cast %235 : i32 to index
    %c6_72 = arith.constant 6 : index
    %237 = memref.load %arg2[%236, %c6_72] : memref<8x9xf32, #tpu.memory_space<smem>>
    %238 = vector.broadcast %237 : f32 to vector<2x16x16xf32>
    %239 = arith.mulf %238, %234 : vector<2x16x16xf32>
    %240 = arith.addf %233, %239 : vector<2x16x16xf32>
    %241 = vector.extract_strided_slice %192 {offsets = [0, 2, 1], sizes = [2, 16, 16], strides = [1, 1, 1]} : vector<2x18x18xf32> to vector<2x16x16xf32>
    %c2_i32_73 = arith.constant 2 : i32
    %242 = arith.addi %0, %c2_i32_73 : i32
    %243 = arith.index_cast %242 : i32 to index
    %c7_74 = arith.constant 7 : index
    %244 = memref.load %arg2[%243, %c7_74] : memref<8x9xf32, #tpu.memory_space<smem>>
    %245 = vector.broadcast %244 : f32 to vector<2x16x16xf32>
    %246 = arith.mulf %245, %241 : vector<2x16x16xf32>
    %247 = arith.addf %240, %246 : vector<2x16x16xf32>
    %248 = vector.extract_strided_slice %192 {offsets = [0, 2, 2], sizes = [2, 16, 16], strides = [1, 1, 1]} : vector<2x18x18xf32> to vector<2x16x16xf32>
    %c2_i32_75 = arith.constant 2 : i32
    %249 = arith.addi %0, %c2_i32_75 : i32
    %250 = arith.index_cast %249 : i32 to index
    %c8_76 = arith.constant 8 : index
    %251 = memref.load %arg2[%250, %c8_76] : memref<8x9xf32, #tpu.memory_space<smem>>
    %252 = vector.broadcast %251 : f32 to vector<2x16x16xf32>
    %253 = arith.mulf %252, %248 : vector<2x16x16xf32>
    %254 = arith.addf %247, %253 : vector<2x16x16xf32>
    %255 = vector.shape_cast %254 : vector<2x16x16xf32> to vector<1x2x16x16xf32>
    %cst_77 = arith.constant dense<0.000000e+00> : vector<1xf32>
    %256 = vector.multi_reduction <add>, %255, %cst_77 [1, 2, 3] : vector<1x2x16x16xf32> to vector<1xf32>
    %257 = vector.shape_cast %256 : vector<1xf32> to vector<1x1x1x1xf32>
    %258 = vector.extract %257[0, 0, 0, 0] : f32 from vector<1x1x1x1xf32>
    %cst_78 = arith.constant 0.001953125 : f32
    %259 = arith.mulf %258, %cst_78 : f32
    %260 = vector.broadcast %259 : f32 to vector<2x16x16xf32>
    %261 = arith.subf %254, %260 : vector<2x16x16xf32>
    %262 = arith.mulf %261, %261 : vector<2x16x16xf32>
    %263 = vector.shape_cast %262 : vector<2x16x16xf32> to vector<1x2x16x16xf32>
    %cst_79 = arith.constant dense<0.000000e+00> : vector<1xf32>
    %264 = vector.multi_reduction <add>, %263, %cst_79 [1, 2, 3] : vector<1x2x16x16xf32> to vector<1xf32>
    %265 = vector.shape_cast %264 : vector<1xf32> to vector<1x1x1x1xf32>
    %266 = vector.extract %265[0, 0, 0, 0] : f32 from vector<1x1x1x1xf32>
    %cst_80 = arith.constant 0.001953125 : f32
    %267 = arith.mulf %266, %cst_80 : f32
    %c2_i32_81 = arith.constant 2 : i32
    %268 = arith.addi %0, %c2_i32_81 : i32
    %269 = arith.index_cast %268 : i32 to index
    %270 = memref.load %arg3[%269] : memref<8xf32, #tpu.memory_space<smem>>
    %cst_82 = arith.constant 9.99999974E-6 : f32
    %271 = arith.addf %267, %cst_82 : f32
    %272 = math.rsqrt %271 : f32
    %273 = arith.mulf %270, %272 : f32
    %274 = vector.broadcast %273 : f32 to vector<2x16x16xf32>
    %275 = arith.mulf %261, %274 : vector<2x16x16xf32>
    %c2_i32_83 = arith.constant 2 : i32
    %276 = arith.addi %0, %c2_i32_83 : i32
    %277 = arith.index_cast %276 : i32 to index
    %278 = memref.load %arg4[%277] : memref<8xf32, #tpu.memory_space<smem>>
    %279 = vector.broadcast %278 : f32 to vector<2x16x16xf32>
    %280 = arith.addf %275, %279 : vector<2x16x16xf32>
    %cst_84 = arith.constant 0.000000e+00 : f32
    %281 = vector.broadcast %cst_84 : f32 to vector<2x16x16xf32>
    %282 = arith.maximumf %280, %281 : vector<2x16x16xf32>
    %c2_85 = arith.constant 2 : index
    %c0_86 = arith.constant 0 : index
    %c0_87 = arith.constant 0 : index
    %c0_88 = arith.constant 0 : index
    %283 = vector.load %arg5[%c2_85, %c0_86, %c0_87, %c0_88] : memref<4x2x16x16xf32, #tpu.memory_space<vmem>>, vector<1x2x16x16xf32>
    %284 = vector.shape_cast %283 : vector<1x2x16x16xf32> to vector<2x16x16xf32>
    %285 = vector.shape_cast %282 : vector<2x16x16xf32> to vector<1x2x16x16xf32>
    tpu.vector_store %arg5[%c2_85, %c0_86, %c0_87, %c0_88], %285 {strides = array<i32>} : memref<4x2x16x16xf32, #tpu.memory_space<vmem>>, vector<1x2x16x16xf32>,
    %c3_89 = arith.constant 3 : index
    %c0_90 = arith.constant 0 : index
    %c0_91 = arith.constant 0 : index
    %c0_92 = arith.constant 0 : index
    %286 = vector.load %arg1[%c3_89, %c0_90, %c0_91, %c0_92] : memref<4x2x18x18xf32, #tpu.memory_space<vmem>>, vector<1x2x18x18xf32>
    %287 = vector.shape_cast %286 : vector<1x2x18x18xf32> to vector<2x18x18xf32>
    %288 = vector.extract_strided_slice %287 {offsets = [0, 0, 0], sizes = [2, 16, 16], strides = [1, 1, 1]} : vector<2x18x18xf32> to vector<2x16x16xf32>
    %c3_i32 = arith.constant 3 : i32
    %289 = arith.addi %0, %c3_i32 : i32
    %290 = arith.index_cast %289 : i32 to index
    %c0_93 = arith.constant 0 : index
    %291 = memref.load %arg2[%290, %c0_93] : memref<8x9xf32, #tpu.memory_space<smem>>
    %292 = vector.broadcast %291 : f32 to vector<2x16x16xf32>
    %293 = arith.mulf %292, %288 : vector<2x16x16xf32>
    %294 = vector.extract_strided_slice %287 {offsets = [0, 0, 1], sizes = [2, 16, 16], strides = [1, 1, 1]} : vector<2x18x18xf32> to vector<2x16x16xf32>
    %c3_i32_94 = arith.constant 3 : i32
    %295 = arith.addi %0, %c3_i32_94 : i32
    %296 = arith.index_cast %295 : i32 to index
    %c1_95 = arith.constant 1 : index
    %297 = memref.load %arg2[%296, %c1_95] : memref<8x9xf32, #tpu.memory_space<smem>>
    %298 = vector.broadcast %297 : f32 to vector<2x16x16xf32>
    %299 = arith.mulf %298, %294 : vector<2x16x16xf32>
    %300 = arith.addf %293, %299 : vector<2x16x16xf32>
    %301 = vector.extract_strided_slice %287 {offsets = [0, 0, 2], sizes = [2, 16, 16], strides = [1, 1, 1]} : vector<2x18x18xf32> to vector<2x16x16xf32>
    %c3_i32_96 = arith.constant 3 : i32
    %302 = arith.addi %0, %c3_i32_96 : i32
    %303 = arith.index_cast %302 : i32 to index
    %c2_97 = arith.constant 2 : index
    %304 = memref.load %arg2[%303, %c2_97] : memref<8x9xf32, #tpu.memory_space<smem>>
    %305 = vector.broadcast %304 : f32 to vector<2x16x16xf32>
    %306 = arith.mulf %305, %301 : vector<2x16x16xf32>
    %307 = arith.addf %300, %306 : vector<2x16x16xf32>
    %308 = vector.extract_strided_slice %287 {offsets = [0, 1, 0], sizes = [2, 16, 16], strides = [1, 1, 1]} : vector<2x18x18xf32> to vector<2x16x16xf32>
    %c3_i32_98 = arith.constant 3 : i32
    %309 = arith.addi %0, %c3_i32_98 : i32
    %310 = arith.index_cast %309 : i32 to index
    %c3_99 = arith.constant 3 : index
    %311 = memref.load %arg2[%310, %c3_99] : memref<8x9xf32, #tpu.memory_space<smem>>
    %312 = vector.broadcast %311 : f32 to vector<2x16x16xf32>
    %313 = arith.mulf %312, %308 : vector<2x16x16xf32>
    %314 = arith.addf %307, %313 : vector<2x16x16xf32>
    %315 = vector.extract_strided_slice %287 {offsets = [0, 1, 1], sizes = [2, 16, 16], strides = [1, 1, 1]} : vector<2x18x18xf32> to vector<2x16x16xf32>
    %c3_i32_100 = arith.constant 3 : i32
    %316 = arith.addi %0, %c3_i32_100 : i32
    %317 = arith.index_cast %316 : i32 to index
    %c4_101 = arith.constant 4 : index
    %318 = memref.load %arg2[%317, %c4_101] : memref<8x9xf32, #tpu.memory_space<smem>>
    %319 = vector.broadcast %318 : f32 to vector<2x16x16xf32>
    %320 = arith.mulf %319, %315 : vector<2x16x16xf32>
    %321 = arith.addf %314, %320 : vector<2x16x16xf32>
    %322 = vector.extract_strided_slice %287 {offsets = [0, 1, 2], sizes = [2, 16, 16], strides = [1, 1, 1]} : vector<2x18x18xf32> to vector<2x16x16xf32>
    %c3_i32_102 = arith.constant 3 : i32
    %323 = arith.addi %0, %c3_i32_102 : i32
    %324 = arith.index_cast %323 : i32 to index
    %c5_103 = arith.constant 5 : index
    %325 = memref.load %arg2[%324, %c5_103] : memref<8x9xf32, #tpu.memory_space<smem>>
    %326 = vector.broadcast %325 : f32 to vector<2x16x16xf32>
    %327 = arith.mulf %326, %322 : vector<2x16x16xf32>
    %328 = arith.addf %321, %327 : vector<2x16x16xf32>
    %329 = vector.extract_strided_slice %287 {offsets = [0, 2, 0], sizes = [2, 16, 16], strides = [1, 1, 1]} : vector<2x18x18xf32> to vector<2x16x16xf32>
    %c3_i32_104 = arith.constant 3 : i32
    %330 = arith.addi %0, %c3_i32_104 : i32
    %331 = arith.index_cast %330 : i32 to index
    %c6_105 = arith.constant 6 : index
    %332 = memref.load %arg2[%331, %c6_105] : memref<8x9xf32, #tpu.memory_space<smem>>
    %333 = vector.broadcast %332 : f32 to vector<2x16x16xf32>
    %334 = arith.mulf %333, %329 : vector<2x16x16xf32>
    %335 = arith.addf %328, %334 : vector<2x16x16xf32>
    %336 = vector.extract_strided_slice %287 {offsets = [0, 2, 1], sizes = [2, 16, 16], strides = [1, 1, 1]} : vector<2x18x18xf32> to vector<2x16x16xf32>
    %c3_i32_106 = arith.constant 3 : i32
    %337 = arith.addi %0, %c3_i32_106 : i32
    %338 = arith.index_cast %337 : i32 to index
    %c7_107 = arith.constant 7 : index
    %339 = memref.load %arg2[%338, %c7_107] : memref<8x9xf32, #tpu.memory_space<smem>>
    %340 = vector.broadcast %339 : f32 to vector<2x16x16xf32>
    %341 = arith.mulf %340, %336 : vector<2x16x16xf32>
    %342 = arith.addf %335, %341 : vector<2x16x16xf32>
    %343 = vector.extract_strided_slice %287 {offsets = [0, 2, 2], sizes = [2, 16, 16], strides = [1, 1, 1]} : vector<2x18x18xf32> to vector<2x16x16xf32>
    %c3_i32_108 = arith.constant 3 : i32
    %344 = arith.addi %0, %c3_i32_108 : i32
    %345 = arith.index_cast %344 : i32 to index
    %c8_109 = arith.constant 8 : index
    %346 = memref.load %arg2[%345, %c8_109] : memref<8x9xf32, #tpu.memory_space<smem>>
    %347 = vector.broadcast %346 : f32 to vector<2x16x16xf32>
    %348 = arith.mulf %347, %343 : vector<2x16x16xf32>
    %349 = arith.addf %342, %348 : vector<2x16x16xf32>
    %350 = vector.shape_cast %349 : vector<2x16x16xf32> to vector<1x2x16x16xf32>
    %cst_110 = arith.constant dense<0.000000e+00> : vector<1xf32>
    %351 = vector.multi_reduction <add>, %350, %cst_110 [1, 2, 3] : vector<1x2x16x16xf32> to vector<1xf32>
    %352 = vector.shape_cast %351 : vector<1xf32> to vector<1x1x1x1xf32>
    %353 = vector.extract %352[0, 0, 0, 0] : f32 from vector<1x1x1x1xf32>
    %cst_111 = arith.constant 0.001953125 : f32
    %354 = arith.mulf %353, %cst_111 : f32
    %355 = vector.broadcast %354 : f32 to vector<2x16x16xf32>
    %356 = arith.subf %349, %355 : vector<2x16x16xf32>
    %357 = arith.mulf %356, %356 : vector<2x16x16xf32>
    %358 = vector.shape_cast %357 : vector<2x16x16xf32> to vector<1x2x16x16xf32>
    %cst_112 = arith.constant dense<0.000000e+00> : vector<1xf32>
    %359 = vector.multi_reduction <add>, %358, %cst_112 [1, 2, 3] : vector<1x2x16x16xf32> to vector<1xf32>
    %360 = vector.shape_cast %359 : vector<1xf32> to vector<1x1x1x1xf32>
    %361 = vector.extract %360[0, 0, 0, 0] : f32 from vector<1x1x1x1xf32>
    %cst_113 = arith.constant 0.001953125 : f32
    %362 = arith.mulf %361, %cst_113 : f32
    %c3_i32_114 = arith.constant 3 : i32
    %363 = arith.addi %0, %c3_i32_114 : i32
    %364 = arith.index_cast %363 : i32 to index
    %365 = memref.load %arg3[%364] : memref<8xf32, #tpu.memory_space<smem>>
    %cst_115 = arith.constant 9.99999974E-6 : f32
    %366 = arith.addf %362, %cst_115 : f32
    %367 = math.rsqrt %366 : f32
    %368 = arith.mulf %365, %367 : f32
    %369 = vector.broadcast %368 : f32 to vector<2x16x16xf32>
    %370 = arith.mulf %356, %369 : vector<2x16x16xf32>
    %c3_i32_116 = arith.constant 3 : i32
    %371 = arith.addi %0, %c3_i32_116 : i32
    %372 = arith.index_cast %371 : i32 to index
    %373 = memref.load %arg4[%372] : memref<8xf32, #tpu.memory_space<smem>>
    %374 = vector.broadcast %373 : f32 to vector<2x16x16xf32>
    %375 = arith.addf %370, %374 : vector<2x16x16xf32>
    %cst_117 = arith.constant 0.000000e+00 : f32
    %376 = vector.broadcast %cst_117 : f32 to vector<2x16x16xf32>
    %377 = arith.maximumf %375, %376 : vector<2x16x16xf32>
    %c3_118 = arith.constant 3 : index
    %c0_119 = arith.constant 0 : index
    %c0_120 = arith.constant 0 : index
    %c0_121 = arith.constant 0 : index
    %378 = vector.load %arg5[%c3_118, %c0_119, %c0_120, %c0_121] : memref<4x2x16x16xf32, #tpu.memory_space<vmem>>, vector<1x2x16x16xf32>
    %379 = vector.shape_cast %378 : vector<1x2x16x16xf32> to vector<2x16x16xf32>
    %380 = vector.shape_cast %377 : vector<2x16x16xf32> to vector<1x2x16x16xf32>
    tpu.vector_store %arg5[%c3_118, %c0_119, %c0_120, %c0_121], %380 {strides = array<i32>} : memref<4x2x16x16xf32, #tpu.memory_space<vmem>>, vector<1x2x16x16xf32>,
    return
  }
  func.func @transform_0(%arg0: i32) -> (i32, i32, i32, i32) {
    %c0_i32 = arith.constant 0 : i32
    %c0_i32_0 = arith.constant 0 : i32
    %c0_i32_1 = arith.constant 0 : i32
    %c0_i32_2 = arith.constant 0 : i32
    return %arg0, %c0_i32, %c0_i32_0, %c0_i32_1 : i32, i32, i32, i32
  }
  func.func @transform_1(%arg0: i32) -> (i32, i32) {
    %c0_i32 = arith.constant 0 : i32
    %c0_i32_0 = arith.constant 0 : i32
    %c0_i32_1 = arith.constant 0 : i32
    return %c0_i32, %c0_i32_0 : i32, i32
  }
  func.func @transform_2(%arg0: i32) -> i32 {
    %c0_i32 = arith.constant 0 : i32
    %c0_i32_0 = arith.constant 0 : i32
    return %c0_i32 : i32
  }
  func.func @transform_3(%arg0: i32) -> i32 {
    %c0_i32 = arith.constant 0 : i32
    %c0_i32_0 = arith.constant 0 : i32
    return %c0_i32 : i32
  }
  func.func @transform_4(%arg0: i32) -> (i32, i32, i32, i32) {
    %c0_i32 = arith.constant 0 : i32
    %c0_i32_0 = arith.constant 0 : i32
    %c0_i32_1 = arith.constant 0 : i32
    %c0_i32_2 = arith.constant 0 : i32
    return %arg0, %c0_i32, %c0_i32_0, %c0_i32_1 : i32, i32, i32, i32
  }
}

</mosaic_0001>

<llo_original>
// kernel: tpu_custom_call.1
$region0: #{tpu_custom_call.1}
  #allocation0 [shape = 'u32[]', space=smem, size = 0x4, offset = 0x4, fixed_abs, tag = 'smem constant byte address 0x4 - core index']
  #allocation1 [shape = 'u32[144,128]{1,0:T(1,128)}', space=vmem, size = 0x12000, scoped, tag = 'internal scratch']
  %s0 = inlined_call_operand.vmem [shape: f32[8,2,18,18], index: 0, kind: input, shape index: {}]
  %s1 = inlined_call_operand.vmem [shape: f32[8,9], index: 1, kind: input, shape index: {}]
  %s2 = inlined_call_operand.vmem [shape: f32[8], index: 2, kind: input, shape index: {}]
  %s3 = inlined_call_operand.vmem [shape: f32[8], index: 3, kind: input, shape index: {}]
  %s4 = inlined_call_operand.hbm [shape: f32[8,2,16,16], index: 4, kind: output, shape index: {}]
  %s5 = sld [smem:[#allocation0]]
  $region61: #{tpu_custom_call.1} parent=0
    _
  %s7 = ssub.s32 1, %s5
  %s8 = scalar_select 0, %s7, %s5
  $region1: #{tpu_custom_call.1} parent=0
    #allocation2 [shape = 'u8[4096]{0}', space=smem, size = 0x1000, scoped, tag = 'input window, operand 1, single buffered']
    #allocation3 [shape = 's32[2]{0}', space=sflag, size = 0x8, scoped, tag = 'scoped memory for tpu_custom_call.1']
    #allocation4 [shape = 's32[2]{0}', space=sflag, size = 0x8, scoped, tag = 'scoped memory for tpu_custom_call.1']
    #allocation5 [shape = 'u8[512]{0}', space=smem, size = 0x200, scoped, tag = 'input window, operand 2, single buffered']
    #allocation6 [shape = 's32[1]{0}', space=sflag, size = 0x4, scoped, tag = 'scoped memory for tpu_custom_call.1']
    #allocation7 [shape = 'u8[512]{0}', space=smem, size = 0x200, scoped, tag = 'input window, operand 3, single buffered']
    #allocation8 [shape = 'u8[131072]{0}', space=vmem, size = 0x20000, scoped, tag = 'output window, operand 0']
    %9 = vsyncpa [#allocation4], 0
    %10 = vsyncpa [#allocation6], 0
    %11 = vsyncpa [#allocation3], 0
    %s12 = scalar_lea.sflag [#allocation3], 1
    %13 = vsyncpa %s12, 0
    loop: start=0, step=1, limit=4
    $region2: #{tpu_custom_call.1} parent=1 // loop_pre_header
      _
    $region3: #{tpu_custom_call.1} parent=1 // loop_header
      %s15 = sphi 0, %s19
      %p16 = scmp.ge.s32.totalorder %s15, 4
      %s25 = sphi 0, %s27
      %s28 = sphi 0, %s25
      %s29 = sphi 0, %s28
      %s45 = sphi 0, %s29
      %s49 = sphi 0, %s49
      %s51 = sphi 0, %s49
      %s52 = sphi 0, %s51
      %s66 = sphi 0, %s52
      %s70 = sphi 0, %s70
      %s72 = sphi 0, %s70
      %s73 = sphi 0, %s72
      %s87 = sphi 0, %s73
      %s91 = sphi 0, %s91
      %s93 = sphi 0, %s91
      %s94 = sphi 0, %s93
      %s108 = sphi 0, %s94
      %s114 = sphi 0, %s116
      %s117 = sphi 0, %s114
      %s118 = sphi 0, %s117
      %s134 = sphi 0, %s118
    $region4: #{tpu_custom_call.1} parent=1 // loop_header_branch
      %18 = sbr.rel (%p16) target = $region8
    $region5: #{tpu_custom_call.1} parent=1 // loop_body
      %s20 = ssub.s32 %s15, 1
      %s21 = ssub.s32 %s15, 2
      %s22 = sadd.s32 %s15, 1
      %s23 = ssub.s32 %s15, %s22
      %p24 = scmp.eq.s32.totalorder %s23, 0
      %s26 = sadd.s32 %s25, 1
      %s27 = scalar_select %p24, %s25, %s26
      %p30 = pneg %p24
      %p31 = scmp.eq.s32.totalorder %s15, 1
      %p32 = por %p30, %p31
      %p33 = scmp.ne.s32.totalorder %s25, %s28
      %p34 = scmp.eq.s32.totalorder %s15, 0
      %p35 = por %p33, %p34
      %p36 = scmp.ne.s32.totalorder %s25, %s28
      %p37 = scmp.eq.s32.totalorder %s20, 1
      %p38 = por %p36, %p37
      %p39 = scmp.ne.s32.totalorder %s28, %s29
      %p40 = scmp.eq.s32.totalorder %s20, 0
      %p41 = por %p39, %p40
      %p42 = scmp.ne.s32.totalorder %s28, %s29
      %p43 = scmp.eq.s32.totalorder %s21, 1
      %p44 = por %p42, %p43
      %p46 = scmp.ne.s32.totalorder %s29, %s45
      %p47 = scmp.eq.s32.totalorder %s21, 0
      %p48 = por %p46, %p47
      %s50 = sadd.s32 %s49, 1
      %p53 = scmp.eq.s32.totalorder %s15, 1
      %p54 = scmp.ne.s32.totalorder %s49, %s51
      %p55 = scmp.eq.s32.totalorder %s15, 0
      %p56 = por %p54, %p55
      %p57 = scmp.ne.s32.totalorder %s49, %s51
      %p58 = scmp.eq.s32.totalorder %s20, 1
      %p59 = por %p57, %p58
      %p60 = scmp.ne.s32.totalorder %s51, %s52
      %p61 = scmp.eq.s32.totalorder %s20, 0
      %p62 = por %p60, %p61
      %p63 = scmp.ne.s32.totalorder %s51, %s52
      %p64 = scmp.eq.s32.totalorder %s21, 1
      %p65 = por %p63, %p64
      %p67 = scmp.ne.s32.totalorder %s52, %s66
      %p68 = scmp.eq.s32.totalorder %s21, 0
      %p69 = por %p67, %p68
      %s71 = sadd.s32 %s70, 1
      %p74 = scmp.eq.s32.totalorder %s15, 1
      %p75 = scmp.ne.s32.totalorder %s70, %s72
      %p76 = scmp.eq.s32.totalorder %s15, 0
      %p77 = por %p75, %p76
      %p78 = scmp.ne.s32.totalorder %s70, %s72
      %p79 = scmp.eq.s32.totalorder %s20, 1
      %p80 = por %p78, %p79
      %p81 = scmp.ne.s32.totalorder %s72, %s73
      %p82 = scmp.eq.s32.totalorder %s20, 0
      %p83 = por %p81, %p82
      %p84 = scmp.ne.s32.totalorder %s72, %s73
      %p85 = scmp.eq.s32.totalorder %s21, 1
      %p86 = por %p84, %p85
      %p88 = scmp.ne.s32.totalorder %s73, %s87
      %p89 = scmp.eq.s32.totalorder %s21, 0
      %p90 = por %p88, %p89
      %s92 = sadd.s32 %s91, 1
      %p95 = scmp.eq.s32.totalorder %s15, 1
      %p96 = scmp.ne.s32.totalorder %s91, %s93
      %p97 = scmp.eq.s32.totalorder %s15, 0
      %p98 = por %p96, %p97
      %p99 = scmp.ne.s32.totalorder %s91, %s93
      %p100 = scmp.eq.s32.totalorder %s20, 1
      %p101 = por %p99, %p100
      %p102 = scmp.ne.s32.totalorder %s93, %s94
      %p103 = scmp.eq.s32.totalorder %s20, 0
      %p104 = por %p102, %p103
      %p105 = scmp.ne.s32.totalorder %s93, %s94
      %p106 = scmp.eq.s32.totalorder %s21, 1
      %p107 = por %p105, %p106
      %p109 = scmp.ne.s32.totalorder %s94, %s108
      %p110 = scmp.eq.s32.totalorder %s21, 0
      %p111 = por %p109, %p110
      %s112 = ssub.s32 %s15, %s22
      %p113 = scmp.eq.s32.totalorder %s112, 0
      %s115 = sadd.s32 %s114, 1
      %s116 = scalar_select %p113, %s114, %s115
      %p119 = pneg %p113
      %p120 = scmp.eq.s32.totalorder %s15, 1
      %p121 = por %p119, %p120
      %p122 = scmp.ne.s32.totalorder %s114, %s117
      %p123 = scmp.eq.s32.totalorder %s15, 0
      %p124 = por %p122, %p123
      %p125 = scmp.ne.s32.totalorder %s114, %s117
      %p126 = scmp.eq.s32.totalorder %s20, 1
      %p127 = por %p125, %p126
      %p128 = scmp.ne.s32.totalorder %s117, %s118
      %p129 = scmp.eq.s32.totalorder %s20, 0
      %p130 = por %p128, %p129
      %p131 = scmp.ne.s32.totalorder %s117, %s118
      %p132 = scmp.eq.s32.totalorder %s21, 1
      %p133 = por %p131, %p132
      %p135 = scmp.ne.s32.totalorder %s118, %s134
      %p136 = scmp.eq.s32.totalorder %s21, 0
      %p137 = por %p135, %p136
      %p138 = scmp.le.s32.totalorder 1, %s15
      %p139 = scmp.lt.s32.totalorder %s15, 3
      %p140 = pnand %p138, %p139
      %p141 = pneg %p140
      // Predicated region
      $region9: #{tpu_custom_call.1} parent=5 // pred_check
        _
      $region10: #{tpu_custom_call.1} parent=5 // pred_check_branch
        %143 = sbr.rel (%p140) target = $region12
      $region11: #{tpu_custom_call.1} parent=5 // pred_region
        %s144 = ssub.s32 %s15, 1
        // Predicated region
        $region13: #{tpu_custom_call.1} parent=11 // pred_check
          %p145 = pneg %p62
        $region14: #{tpu_custom_call.1} parent=11 // pred_check_branch
          %147 = sbr.rel (%p145) target = $region16
        $region15: #{tpu_custom_call.1} parent=11 // pred_region
          %s149 = ssub.s32 128, 128
          %150 = vsyncadd [#allocation4], %s149
          %s152 = sshll.u32 %s1, 4
          %s153 = int_to_ptr.vmem [resolvable:$true] %s152
          %155 = dma.vmem_to_smem %s153, 128, [#allocation2], [#allocation4]
        $region16: #{tpu_custom_call.1} parent=11 // pred_fallthru
          _
        // Predicated region
        $region17: #{tpu_custom_call.1} parent=11 // pred_check
          %p156 = pneg %p83
        $region18: #{tpu_custom_call.1} parent=11 // pred_check_branch
          %158 = sbr.rel (%p156) target = $region20
        $region19: #{tpu_custom_call.1} parent=11 // pred_region
          %s160 = ssub.s32 16, 16
          %161 = vsyncadd [#allocation6], %s160
          %s163 = sshll.u32 %s2, 4
          %s164 = int_to_ptr.vmem [resolvable:$true] %s163
          %166 = dma.vmem_to_smem %s164, 16, [#allocation5], [#allocation6]
        $region20: #{tpu_custom_call.1} parent=11 // pred_fallthru
          _
        // Predicated region
        $region21: #{tpu_custom_call.1} parent=11 // pred_check
          %p167 = pneg %p104
        $region22: #{tpu_custom_call.1} parent=11 // pred_check_branch
          %169 = sbr.rel (%p167) target = $region24
        $region23: #{tpu_custom_call.1} parent=11 // pred_region
          %s171 = ssub.s32 16, 16
          %172 = vsyncadd [#allocation6], %s171
          %s174 = sshll.u32 %s3, 4
          %s175 = int_to_ptr.vmem [resolvable:$true] %s174
          %177 = dma.vmem_to_smem %s175, 16, [#allocation7], [#allocation6]
        $region24: #{tpu_custom_call.1} parent=11 // pred_fallthru
          _
      $region12: #{tpu_custom_call.1} parent=5 // pred_fallthru
        _
      %p178 = scmp.lt.s32.totalorder %s15, 2
      // Predicated region
      $region25: #{tpu_custom_call.1} parent=5 // pred_check
        %p179 = pneg %p178
      $region26: #{tpu_custom_call.1} parent=5 // pred_check_branch
        %181 = sbr.rel (%p179) target = $region28
      $region27: #{tpu_custom_call.1} parent=5 // pred_region
        // Predicated region
        $region29: #{tpu_custom_call.1} parent=27 // pred_check
          %p182 = pneg %p35
        $region30: #{tpu_custom_call.1} parent=27 // pred_check_branch
          %184 = sbr.rel (%p182) target = $region32
        $region31: #{tpu_custom_call.1} parent=27 // pred_region
          %s185 = smul.u32 4, %s15
          %p186 = scmp.lt.s32.totalorder %s185, 7
          %s187 = scalar_select %p186, %s185, 7
          %s188 = smul.addr %s187, 6
          %s189 = smul.addr %s188, 8
          %s190 = scalar_lea.vmem %s0, %s189
          %s191 = smul.u32 4, %s15
        $region32: #{tpu_custom_call.1} parent=27 // pred_fallthru
          _
      $region28: #{tpu_custom_call.1} parent=5 // pred_fallthru
        _
      %p192 = scmp.le.s32.totalorder 1, %s15
      %p193 = scmp.lt.s32.totalorder %s15, 3
      %p194 = pnand %p192, %p193
      %p195 = pneg %p194
      // Predicated region
      $region33: #{tpu_custom_call.1} parent=5 // pred_check
        _
      $region34: #{tpu_custom_call.1} parent=5 // pred_check_branch
        %197 = sbr.rel (%p194) target = $region36
      $region35: #{tpu_custom_call.1} parent=5 // pred_region
        %s198 = ssub.s32 %s15, 1
        // Predicated region
        $region37: #{tpu_custom_call.1} parent=35 // pred_check
          %p199 = pneg %p62
        $region38: #{tpu_custom_call.1} parent=35 // pred_check_branch
          %201 = sbr.rel (%p199) target = $region40
        $region39: #{tpu_custom_call.1} parent=35 // pred_region
          %202 = dma.done [#allocation4], 128
        $region40: #{tpu_custom_call.1} parent=35 // pred_fallthru
          _
        // Predicated region
        $region41: #{tpu_custom_call.1} parent=35 // pred_check
          %p203 = pneg %p83
        $region42: #{tpu_custom_call.1} parent=35 // pred_check_branch
          %205 = sbr.rel (%p203) target = $region44
        $region43: #{tpu_custom_call.1} parent=35 // pred_region
          %206 = dma.done [#allocation6], 16
        $region44: #{tpu_custom_call.1} parent=35 // pred_fallthru
          _
        // Predicated region
        $region45: #{tpu_custom_call.1} parent=35 // pred_check
          %p207 = pneg %p104
        $region46: #{tpu_custom_call.1} parent=35 // pred_check_branch
          %209 = sbr.rel (%p207) target = $region48
        $region47: #{tpu_custom_call.1} parent=35 // pred_region
          %210 = dma.done [#allocation6], 16
        $region48: #{tpu_custom_call.1} parent=35 // pred_fallthru
          _
        %211 = sfence
        %s212 = smul.u32 4, %s20
        %p213 = scmp.lt.s32.totalorder %s212, 7
        %s214 = scalar_select %p213, %s212, 7
        %s215 = smul.addr %s214, 6
        %s216 = smul.addr %s215, 8
        %s217 = scalar_lea.vmem %s0, %s216
        %p218 = pneg %p41
        %p219 = pneg %p38
        %p220 = pneg %p62
        %p221 = pneg %p59
        %p222 = pneg %p83
        %p223 = pneg %p80
        %p224 = pneg %p104
        %p225 = pneg %p101
        %p226 = pneg %p130
        %p227 = pneg %p127
        %s228 = sand.u32 %s117, 1
        %s229 = scalar_lea.sflag [#allocation3], %s228
        %s230 = sand.u32 %s117, 1
        %s231 = smul.addr %s230, 128
        %s232 = scalar_lea.vmem [#allocation8], %s231
        %s233 = smul.u32 4, %s20
        %p234 = scmp.lt.s32.totalorder %s233, 7
        %s235 = scalar_select %p234, %s233, 7
        %s236 = smul.addr %s235, 6
        %s237 = smul.addr %s236, 8
        %s238 = scalar_lea.vmem %s0, %s237
        %s239 = smul.u32 4, %s20
        %s240 = smul.u32 4, %s20
        %s241 = smul.u32 %s20, 4
        %v242 = vld [vmem:[%s238] sm:$0xff]
        %v243 = vld [vmem:[%s238 + $0x8] sm:$0xff]
        %v244 = vld [vmem:[%s238 + $0x10] sm:$0x3]
        %v245 = vld [vmem:[%s238 + $0x18] sm:$0xff]
        %v246 = vld [vmem:[%s238 + $0x20] sm:$0xff]
        %v247 = vld [vmem:[%s238 + $0x28] sm:$0x3]
        %s248 = smul.u32 %s241, 128
        %s249 = sld [smem:[#allocation2 + %s248]]
        %v250 = vstv %s249
        %v251 = vmul.f32 %v250, %v242
        %v252 = vmul.f32 %v250, %v243
        %v253 = vmul.f32 %v250, %v245
        %v254 = vmul.f32 %v250, %v246
        %s255 = sadd.s32 %s248, 1
        %s256 = sld [smem:[#allocation2 + %s255]]
        %v257 = vstv %s256
        %v258 = vmul.f32 %v257, %v242
        %v259 = vmul.f32 %v257, %v243
        %v260 = vmul.f32 %v257, %v245
        %v261 = vmul.f32 %v257, %v246
        %266 = vrot.lane.b32.xlu0 %v258, 127
        %v267 = vpop.permute.xlu0 %266
        %268 = vrot.lane.b32.xlu0 %v259, 127
        %v269 = vpop.permute.xlu0 %268
        %270 = vrot.lane.b32.xlu0 %v260, 127
        %v271 = vpop.permute.xlu0 %270
        %272 = vrot.lane.b32.xlu0 %v261, 127
        %v273 = vpop.permute.xlu0 %272
        %v278 = vadd.f32 %v251, %v267
        %v279 = vadd.f32 %v252, %v269
        %v280 = vadd.f32 %v253, %v271
        %v281 = vadd.f32 %v254, %v273
        %s282 = sadd.s32 %s248, 2
        %s283 = sld [smem:[#allocation2 + %s282]]
        %v284 = vstv %s283
        %v285 = vmul.f32 %v284, %v242
        %v286 = vmul.f32 %v284, %v243
        %v287 = vmul.f32 %v284, %v245
        %v288 = vmul.f32 %v284, %v246
        %293 = vrot.lane.b32.xlu0 %v285, 126
        %v294 = vpop.permute.xlu0 %293
        %295 = vrot.lane.b32.xlu0 %v286, 126
        %v296 = vpop.permute.xlu0 %295
        %297 = vrot.lane.b32.xlu0 %v287, 126
        %v298 = vpop.permute.xlu0 %297
        %299 = vrot.lane.b32.xlu0 %v288, 126
        %v300 = vpop.permute.xlu0 %299
        %v305 = vadd.f32 %v278, %v294
        %v306 = vadd.f32 %v279, %v296
        %v307 = vadd.f32 %v280, %v298
        %v308 = vadd.f32 %v281, %v300
        %s309 = sadd.s32 %s248, 3
        %s310 = sld [smem:[#allocation2 + %s309]]
        %v311 = vstv %s310
        %v312 = vmul.f32 %v311, %v242
        %v313 = vmul.f32 %v311, %v243
        %v314 = vmul.f32 %v311, %v244
        %v315 = vmul.f32 %v311, %v245
        %v316 = vmul.f32 %v311, %v246
        %v317 = vmul.f32 %v311, %v247
        %vm324 = vcmask 1046528
        %v325 = vrot.slane %v312, 1
        %v326 = vrot.slane %v313, 1
        %v327 = vsel %vm324, %v325, %v326
        %v328 = vrot.slane %v314, 1
        %v329 = vsel %vm324, %v326, %v328
        %v330 = vrot.slane %v315, 1
        %v331 = vrot.slane %v316, 1
        %v332 = vsel %vm324, %v330, %v331
        %v333 = vrot.slane %v317, 1
        %v334 = vsel %vm324, %v331, %v333
        %v339 = vadd.f32 %v305, %v327
        %v340 = vadd.f32 %v306, %v329
        %v341 = vadd.f32 %v307, %v332
        %v342 = vadd.f32 %v308, %v334
        %s343 = sadd.s32 %s248, 4
        %s344 = sld [smem:[#allocation2 + %s343]]
        %v345 = vstv %s344
        %v346 = vmul.f32 %v345, %v242
        %v347 = vmul.f32 %v345, %v243
        %v348 = vmul.f32 %v345, %v244
        %v349 = vmul.f32 %v345, %v245
        %v350 = vmul.f32 %v345, %v246
        %v351 = vmul.f32 %v345, %v247
        %v358 = vrot.slane %v346, 1
        %v359 = vrot.slane %v347, 1
        %v360 = vsel %vm324, %v358, %v359
        %v361 = vrot.slane %v348, 1
        %v362 = vsel %vm324, %v359, %v361
        %v363 = vrot.slane %v349, 1
        %v364 = vrot.slane %v350, 1
        %v365 = vsel %vm324, %v363, %v364
        %v366 = vrot.slane %v351, 1
        %v367 = vsel %vm324, %v364, %v366
        %368 = vrot.lane.b32.xlu0 %v360, 127
        %v369 = vpop.permute.xlu0 %368
        %370 = vrot.lane.b32.xlu0 %v362, 127
        %v371 = vpop.permute.xlu0 %370
        %372 = vrot.lane.b32.xlu0 %v365, 127
        %v373 = vpop.permute.xlu0 %372
        %374 = vrot.lane.b32.xlu0 %v367, 127
        %v375 = vpop.permute.xlu0 %374
        %v380 = vadd.f32 %v339, %v369
        %v381 = vadd.f32 %v340, %v371
        %v382 = vadd.f32 %v341, %v373
        %v383 = vadd.f32 %v342, %v375
        %s384 = sadd.s32 %s248, 5
        %s385 = sld [smem:[#allocation2 + %s384]]
        %v386 = vstv %s385
        %v387 = vmul.f32 %v386, %v242
        %v388 = vmul.f32 %v386, %v243
        %v389 = vmul.f32 %v386, %v244
        %v390 = vmul.f32 %v386, %v245
        %v391 = vmul.f32 %v386, %v246
        %v392 = vmul.f32 %v386, %v247
        %v399 = vrot.slane %v387, 1
        %v400 = vrot.slane %v388, 1
        %v401 = vsel %vm324, %v399, %v400
        %v402 = vrot.slane %v389, 1
        %v403 = vsel %vm324, %v400, %v402
        %v404 = vrot.slane %v390, 1
        %v405 = vrot.slane %v391, 1
        %v406 = vsel %vm324, %v404, %v405
        %v407 = vrot.slane %v392, 1
        %v408 = vsel %vm324, %v405, %v407
        %409 = vrot.lane.b32.xlu0 %v401, 126
        %v410 = vpop.permute.xlu0 %409
        %411 = vrot.lane.b32.xlu0 %v403, 126
        %v412 = vpop.permute.xlu0 %411
        %413 = vrot.lane.b32.xlu0 %v406, 126
        %v414 = vpop.permute.xlu0 %413
        %415 = vrot.lane.b32.xlu0 %v408, 126
        %v416 = vpop.permute.xlu0 %415
        %v421 = vadd.f32 %v380, %v410
        %v422 = vadd.f32 %v381, %v412
        %v423 = vadd.f32 %v382, %v414
        %v424 = vadd.f32 %v383, %v416
        %s425 = sadd.s32 %s248, 6
        %s426 = sld [smem:[#allocation2 + %s425]]
        %v427 = vstv %s426
        %v428 = vmul.f32 %v427, %v242
        %v429 = vmul.f32 %v427, %v243
        %v430 = vmul.f32 %v427, %v244
        %v431 = vmul.f32 %v427, %v245
        %v432 = vmul.f32 %v427, %v246
        %v433 = vmul.f32 %v427, %v247
        %vm440 = vcmask 1045504
        %v441 = vrot.slane %v428, 2
        %v442 = vrot.slane %v429, 2
        %v443 = vsel %vm440, %v441, %v442
        %v444 = vrot.slane %v430, 2
        %v445 = vsel %vm440, %v442, %v444
        %v446 = vrot.slane %v431, 2
        %v447 = vrot.slane %v432, 2
        %v448 = vsel %vm440, %v446, %v447
        %v449 = vrot.slane %v433, 2
        %v450 = vsel %vm440, %v447, %v449
        %v455 = vadd.f32 %v421, %v443
        %v456 = vadd.f32 %v422, %v445
        %v457 = vadd.f32 %v423, %v448
        %v458 = vadd.f32 %v424, %v450
        %s459 = sadd.s32 %s248, 7
        %s460 = sld [smem:[#allocation2 + %s459]]
        %v461 = vstv %s460
        %v462 = vmul.f32 %v461, %v242
        %v463 = vmul.f32 %v461, %v243
        %v464 = vmul.f32 %v461, %v244
        %v465 = vmul.f32 %v461, %v245
        %v466 = vmul.f32 %v461, %v246
        %v467 = vmul.f32 %v461, %v247
        %v474 = vrot.slane %v462, 2
        %v475 = vrot.slane %v463, 2
        %v476 = vsel %vm440, %v474, %v475
        %v477 = vrot.slane %v464, 2
        %v478 = vsel %vm440, %v475, %v477
        %v479 = vrot.slane %v465, 2
        %v480 = vrot.slane %v466, 2
        %v481 = vsel %vm440, %v479, %v480
        %v482 = vrot.slane %v467, 2
        %v483 = vsel %vm440, %v480, %v482
        %484 = vrot.lane.b32.xlu0 %v476, 127
        %v485 = vpop.permute.xlu0 %484
        %486 = vrot.lane.b32.xlu0 %v478, 127
        %v487 = vpop.permute.xlu0 %486
        %488 = vrot.lane.b32.xlu0 %v481, 127
        %v489 = vpop.permute.xlu0 %488
        %490 = vrot.lane.b32.xlu0 %v483, 127
        %v491 = vpop.permute.xlu0 %490
        %v496 = vadd.f32 %v455, %v485
        %v497 = vadd.f32 %v456, %v487
        %v498 = vadd.f32 %v457, %v489
        %v499 = vadd.f32 %v458, %v491
        %s500 = sadd.s32 %s248, 8
        %s501 = sld [smem:[#allocation2 + %s500]]
        %v502 = vstv %s501
        %v503 = vmul.f32 %v502, %v242
        %v504 = vmul.f32 %v502, %v243
        %v505 = vmul.f32 %v502, %v244
        %v506 = vmul.f32 %v502, %v245
        %v507 = vmul.f32 %v502, %v246
        %v508 = vmul.f32 %v502, %v247
        %v515 = vrot.slane %v503, 2
        %v516 = vrot.slane %v504, 2
        %v517 = vsel %vm440, %v515, %v516
        %v518 = vrot.slane %v505, 2
        %v519 = vsel %vm440, %v516, %v518
        %v520 = vrot.slane %v506, 2
        %v521 = vrot.slane %v507, 2
        %v522 = vsel %vm440, %v520, %v521
        %v523 = vrot.slane %v508, 2
        %v524 = vsel %vm440, %v521, %v523
        %525 = vrot.lane.b32.xlu0 %v517, 126
        %v526 = vpop.permute.xlu0 %525
        %527 = vrot.lane.b32.xlu0 %v519, 126
        %v528 = vpop.permute.xlu0 %527
        %529 = vrot.lane.b32.xlu0 %v522, 126
        %v530 = vpop.permute.xlu0 %529
        %531 = vrot.lane.b32.xlu0 %v524, 126
        %v532 = vpop.permute.xlu0 %531
        %v537 = vadd.f32 %v496, %v526
        %v538 = vadd.f32 %v497, %v528
        %v539 = vadd.f32 %v498, %v530
        %v540 = vadd.f32 %v499, %v532
        %vm541 = vcmask 130048
        %v542 = vsel %vm541, %v537, 0.0
        %v543 = vsel %vm541, %v538, 0.0
        %v544 = vadd.f32 %v542, %v543
        %v545 = vsel %vm541, %v539, 0.0
        %v546 = vadd.f32 %v544, %v545
        %v547 = vsel %vm541, %v540, 0.0
        %v548 = vadd.f32 %v546, %v547
        %549 = vadd.xlane.f32.xlu0 %v548
        %v550 = vpop.xlane.xlu0 %549
        %v551 = vrot.slane %v550, 4
        %v552 = vadd.f32 %v550, %v551
        %v553 = vrot.slane %v552, 2
        %v554 = vadd.f32 %v552, %v553
        %v555 = vrot.slane %v554, 1
        %v556 = vadd.f32 %v554, %v555
        %s557 = vtos %v556
        %s558 = smul.f32 %s557, 0.001953125
        %v559 = vstv %s558
        %v560 = vsub.f32 %v537, %v559
        %v561 = vsub.f32 %v538, %v559
        %v562 = vsub.f32 %v539, %v559
        %v563 = vsub.f32 %v540, %v559
        %v564 = vmul.f32 %v560, %v560
        %v565 = vmul.f32 %v561, %v561
        %v566 = vmul.f32 %v562, %v562
        %v567 = vmul.f32 %v563, %v563
        %v568 = vsel %vm541, %v564, 0.0
        %v569 = vsel %vm541, %v565, 0.0
        %v570 = vadd.f32 %v568, %v569
        %v571 = vsel %vm541, %v566, 0.0
        %v572 = vadd.f32 %v570, %v571
        %v573 = vsel %vm541, %v567, 0.0
        %v574 = vadd.f32 %v572, %v573
        %575 = vadd.xlane.f32.xlu0 %v574
        %v576 = vpop.xlane.xlu0 %575
        %v577 = vrot.slane %v576, 4
        %v578 = vadd.f32 %v576, %v577
        %v579 = vrot.slane %v578, 2
        %v580 = vadd.f32 %v578, %v579
        %v581 = vrot.slane %v580, 1
        %v582 = vadd.f32 %v580, %v581
        %s583 = vtos %v582
        %s584 = smul.f32 %s583, 0.001953125
        %s585 = sld [smem:[#allocation5 + %s241]]
        %s586 = sadd.f32 %s584, 1e-05
        %v587 = vstv %s586
        %v588 = vrsqrt.pop %v587
        %s589 = vtos %v588
        %s590 = smul.f32 %s585, %s589
        %v591 = vstv %s590
        %v592 = vmul.f32 %v560, %v591
        %v593 = vmul.f32 %v561, %v591
        %v594 = vmul.f32 %v562, %v591
        %v595 = vmul.f32 %v563, %v591
        %s596 = sld [smem:[#allocation7 + %s241]]
        %v597 = vstv %s596
        %v598 = vadd.f32 %v592, %v597
        %v599 = vadd.f32 %v593, %v597
        %v600 = vadd.f32 %v594, %v597
        %v601 = vadd.f32 %v595, %v597
        %v602 = vmax.f32 %v598, 0.0
        %v603 = vmax.f32 %v599, 0.0
        %v604 = vmax.f32 %v600, 0.0
        %v605 = vmax.f32 %v601, 0.0
        %606 = vst.msk [vmem:[%s232] sm:$0xff] %vm541, %v602
        %607 = vst.msk [vmem:[%s232 + $0x8] sm:$0xff] %vm541, %v603
        %608 = vst.msk [vmem:[%s232 + $0x10] sm:$0xff] %vm541, %v604
        %609 = vst.msk [vmem:[%s232 + $0x18] sm:$0xff] %vm541, %v605
        %s610 = scalar_lea.vmem %s238, 48
        %v611 = vld [vmem:[%s610] sm:$0xff]
        %v612 = vld [vmem:[%s610 + $0x8] sm:$0xff]
        %v613 = vld [vmem:[%s610 + $0x10] sm:$0x3]
        %v614 = vld [vmem:[%s610 + $0x18] sm:$0xff]
        %v615 = vld [vmem:[%s610 + $0x20] sm:$0xff]
        %v616 = vld [vmem:[%s610 + $0x28] sm:$0x3]
        %s617 = sadd.s32 %s241, 1
        %s618 = smul.u32 %s617, 128
        %s619 = sld [smem:[#allocation2 + %s618]]
        %v620 = vstv %s619
        %v621 = vmul.f32 %v620, %v611
        %v622 = vmul.f32 %v620, %v612
        %v623 = vmul.f32 %v620, %v614
        %v624 = vmul.f32 %v620, %v615
        %s625 = sadd.s32 %s618, 1
        %s626 = sld [smem:[#allocation2 + %s625]]
        %v627 = vstv %s626
        %v628 = vmul.f32 %v627, %v611
        %v629 = vmul.f32 %v627, %v612
        %v630 = vmul.f32 %v627, %v614
        %v631 = vmul.f32 %v627, %v615
        %636 = vrot.lane.b32.xlu0 %v628, 127
        %v637 = vpop.permute.xlu0 %636
        %638 = vrot.lane.b32.xlu0 %v629, 127
        %v639 = vpop.permute.xlu0 %638
        %640 = vrot.lane.b32.xlu0 %v630, 127
        %v641 = vpop.permute.xlu0 %640
        %642 = vrot.lane.b32.xlu0 %v631, 127
        %v643 = vpop.permute.xlu0 %642
        %v648 = vadd.f32 %v621, %v637
        %v649 = vadd.f32 %v622, %v639
        %v650 = vadd.f32 %v623, %v641
        %v651 = vadd.f32 %v624, %v643
        %s652 = sadd.s32 %s618, 2
        %s653 = sld [smem:[#allocation2 + %s652]]
        %v654 = vstv %s653
        %v655 = vmul.f32 %v654, %v611
        %v656 = vmul.f32 %v654, %v612
        %v657 = vmul.f32 %v654, %v614
        %v658 = vmul.f32 %v654, %v615
        %663 = vrot.lane.b32.xlu0 %v655, 126
        %v664 = vpop.permute.xlu0 %663
        %665 = vrot.lane.b32.xlu0 %v656, 126
        %v666 = vpop.permute.xlu0 %665
        %667 = vrot.lane.b32.xlu0 %v657, 126
        %v668 = vpop.permute.xlu0 %667
        %669 = vrot.lane.b32.xlu0 %v658, 126
        %v670 = vpop.permute.xlu0 %669
        %v675 = vadd.f32 %v648, %v664
        %v676 = vadd.f32 %v649, %v666
        %v677 = vadd.f32 %v650, %v668
        %v678 = vadd.f32 %v651, %v670
        %s679 = sadd.s32 %s618, 3
        %s680 = sld [smem:[#allocation2 + %s679]]
        %v681 = vstv %s680
        %v682 = vmul.f32 %v681, %v611
        %v683 = vmul.f32 %v681, %v612
        %v684 = vmul.f32 %v681, %v613
        %v685 = vmul.f32 %v681, %v614
        %v686 = vmul.f32 %v681, %v615
        %v687 = vmul.f32 %v681, %v616
        %v694 = vrot.slane %v682, 1
        %v695 = vrot.slane %v683, 1
        %v696 = vsel %vm324, %v694, %v695
        %v697 = vrot.slane %v684, 1
        %v698 = vsel %vm324, %v695, %v697
        %v699 = vrot.slane %v685, 1
        %v700 = vrot.slane %v686, 1
        %v701 = vsel %vm324, %v699, %v700
        %v702 = vrot.slane %v687, 1
        %v703 = vsel %vm324, %v700, %v702
        %v708 = vadd.f32 %v675, %v696
        %v709 = vadd.f32 %v676, %v698
        %v710 = vadd.f32 %v677, %v701
        %v711 = vadd.f32 %v678, %v703
        %s712 = sadd.s32 %s618, 4
        %s713 = sld [smem:[#allocation2 + %s712]]
        %v714 = vstv %s713
        %v715 = vmul.f32 %v714, %v611
        %v716 = vmul.f32 %v714, %v612
        %v717 = vmul.f32 %v714, %v613
        %v718 = vmul.f32 %v714, %v614
        %v719 = vmul.f32 %v714, %v615
        %v720 = vmul.f32 %v714, %v616
        %v727 = vrot.slane %v715, 1
        %v728 = vrot.slane %v716, 1
        %v729 = vsel %vm324, %v727, %v728
        %v730 = vrot.slane %v717, 1
        %v731 = vsel %vm324, %v728, %v730
        %v732 = vrot.slane %v718, 1
        %v733 = vrot.slane %v719, 1
        %v734 = vsel %vm324, %v732, %v733
        %v735 = vrot.slane %v720, 1
        %v736 = vsel %vm324, %v733, %v735
        %737 = vrot.lane.b32.xlu0 %v729, 127
        %v738 = vpop.permute.xlu0 %737
        %739 = vrot.lane.b32.xlu0 %v731, 127
        %v740 = vpop.permute.xlu0 %739
        %741 = vrot.lane.b32.xlu0 %v734, 127
        %v742 = vpop.permute.xlu0 %741
        %743 = vrot.lane.b32.xlu0 %v736, 127
        %v744 = vpop.permute.xlu0 %743
        %v749 = vadd.f32 %v708, %v738
        %v750 = vadd.f32 %v709, %v740
        %v751 = vadd.f32 %v710, %v742
        %v752 = vadd.f32 %v711, %v744
        %s753 = sadd.s32 %s618, 5
        %s754 = sld [smem:[#allocation2 + %s753]]
        %v755 = vstv %s754
        %v756 = vmul.f32 %v755, %v611
        %v757 = vmul.f32 %v755, %v612
        %v758 = vmul.f32 %v755, %v613
        %v759 = vmul.f32 %v755, %v614
        %v760 = vmul.f32 %v755, %v615
        %v761 = vmul.f32 %v755, %v616
        %v768 = vrot.slane %v756, 1
        %v769 = vrot.slane %v757, 1
        %v770 = vsel %vm324, %v768, %v769
        %v771 = vrot.slane %v758, 1
        %v772 = vsel %vm324, %v769, %v771
        %v773 = vrot.slane %v759, 1
        %v774 = vrot.slane %v760, 1
        %v775 = vsel %vm324, %v773, %v774
        %v776 = vrot.slane %v761, 1
        %v777 = vsel %vm324, %v774, %v776
        %778 = vrot.lane.b32.xlu0 %v770, 126
        %v779 = vpop.permute.xlu0 %778
        %780 = vrot.lane.b32.xlu0 %v772, 126
        %v781 = vpop.permute.xlu0 %780
        %782 = vrot.lane.b32.xlu0 %v775, 126
        %v783 = vpop.permute.xlu0 %782
        %784 = vrot.lane.b32.xlu0 %v777, 126
        %v785 = vpop.permute.xlu0 %784
        %v790 = vadd.f32 %v749, %v779
        %v791 = vadd.f32 %v750, %v781
        %v792 = vadd.f32 %v751, %v783
        %v793 = vadd.f32 %v752, %v785
        %s794 = sadd.s32 %s618, 6
        %s795 = sld [smem:[#allocation2 + %s794]]
        %v796 = vstv %s795
        %v797 = vmul.f32 %v796, %v611
        %v798 = vmul.f32 %v796, %v612
        %v799 = vmul.f32 %v796, %v613
        %v800 = vmul.f32 %v796, %v614
        %v801 = vmul.f32 %v796, %v615
        %v802 = vmul.f32 %v796, %v616
        %v809 = vrot.slane %v797, 2
        %v810 = vrot.slane %v798, 2
        %v811 = vsel %vm440, %v809, %v810
        %v812 = vrot.slane %v799, 2
        %v813 = vsel %vm440, %v810, %v812
        %v814 = vrot.slane %v800, 2
        %v815 = vrot.slane %v801, 2
        %v816 = vsel %vm440, %v814, %v815
        %v817 = vrot.slane %v802, 2
        %v818 = vsel %vm440, %v815, %v817
        %v823 = vadd.f32 %v790, %v811
        %v824 = vadd.f32 %v791, %v813
        %v825 = vadd.f32 %v792, %v816
        %v826 = vadd.f32 %v793, %v818
        %s827 = sadd.s32 %s618, 7
        %s828 = sld [smem:[#allocation2 + %s827]]
        %v829 = vstv %s828
        %v830 = vmul.f32 %v829, %v611
        %v831 = vmul.f32 %v829, %v612
        %v832 = vmul.f32 %v829, %v613
        %v833 = vmul.f32 %v829, %v614
        %v834 = vmul.f32 %v829, %v615
        %v835 = vmul.f32 %v829, %v616
        %v842 = vrot.slane %v830, 2
        %v843 = vrot.slane %v831, 2
        %v844 = vsel %vm440, %v842, %v843
        %v845 = vrot.slane %v832, 2
        %v846 = vsel %vm440, %v843, %v845
        %v847 = vrot.slane %v833, 2
        %v848 = vrot.slane %v834, 2
        %v849 = vsel %vm440, %v847, %v848
        %v850 = vrot.slane %v835, 2
        %v851 = vsel %vm440, %v848, %v850
        %852 = vrot.lane.b32.xlu0 %v844, 127
        %v853 = vpop.permute.xlu0 %852
        %854 = vrot.lane.b32.xlu0 %v846, 127
        %v855 = vpop.permute.xlu0 %854
        %856 = vrot.lane.b32.xlu0 %v849, 127
        %v857 = vpop.permute.xlu0 %856
        %858 = vrot.lane.b32.xlu0 %v851, 127
        %v859 = vpop.permute.xlu0 %858
        %v864 = vadd.f32 %v823, %v853
        %v865 = vadd.f32 %v824, %v855
        %v866 = vadd.f32 %v825, %v857
        %v867 = vadd.f32 %v826, %v859
        %s868 = sadd.s32 %s618, 8
        %s869 = sld [smem:[#allocation2 + %s868]]
        %v870 = vstv %s869
        %v871 = vmul.f32 %v870, %v611
        %v872 = vmul.f32 %v870, %v612
        %v873 = vmul.f32 %v870, %v613
        %v874 = vmul.f32 %v870, %v614
        %v875 = vmul.f32 %v870, %v615
        %v876 = vmul.f32 %v870, %v616
        %v883 = vrot.slane %v871, 2
        %v884 = vrot.slane %v872, 2
        %v885 = vsel %vm440, %v883, %v884
        %v886 = vrot.slane %v873, 2
        %v887 = vsel %vm440, %v884, %v886
        %v888 = vrot.slane %v874, 2
        %v889 = vrot.slane %v875, 2
        %v890 = vsel %vm440, %v888, %v889
        %v891 = vrot.slane %v876, 2
        %v892 = vsel %vm440, %v889, %v891
        %893 = vrot.lane.b32.xlu0 %v885, 126
        %v894 = vpop.permute.xlu0 %893
        %895 = vrot.lane.b32.xlu0 %v887, 126
        %v896 = vpop.permute.xlu0 %895
        %897 = vrot.lane.b32.xlu0 %v890, 126
        %v898 = vpop.permute.xlu0 %897
        %899 = vrot.lane.b32.xlu0 %v892, 126
        %v900 = vpop.permute.xlu0 %899
        %v905 = vadd.f32 %v864, %v894
        %v906 = vadd.f32 %v865, %v896
        %v907 = vadd.f32 %v866, %v898
        %v908 = vadd.f32 %v867, %v900
        %v909 = vsel %vm541, %v905, 0.0
        %v910 = vsel %vm541, %v906, 0.0
        %v911 = vadd.f32 %v909, %v910
        %v912 = vsel %vm541, %v907, 0.0
        %v913 = vadd.f32 %v911, %v912
        %v914 = vsel %vm541, %v908, 0.0
        %v915 = vadd.f32 %v913, %v914
        %916 = vadd.xlane.f32.xlu0 %v915
        %v917 = vpop.xlane.xlu0 %916
        %v918 = vrot.slane %v917, 4
        %v919 = vadd.f32 %v917, %v918
        %v920 = vrot.slane %v919, 2
        %v921 = vadd.f32 %v919, %v920
        %v922 = vrot.slane %v921, 1
        %v923 = vadd.f32 %v921, %v922
        %s924 = vtos %v923
        %s925 = smul.f32 %s924, 0.001953125
        %v926 = vstv %s925
        %v927 = vsub.f32 %v905, %v926
        %v928 = vsub.f32 %v906, %v926
        %v929 = vsub.f32 %v907, %v926
        %v930 = vsub.f32 %v908, %v926
        %v931 = vmul.f32 %v927, %v927
        %v932 = vmul.f32 %v928, %v928
        %v933 = vmul.f32 %v929, %v929
        %v934 = vmul.f32 %v930, %v930
        %v935 = vsel %vm541, %v931, 0.0
        %v936 = vsel %vm541, %v932, 0.0
        %v937 = vadd.f32 %v935, %v936
        %v938 = vsel %vm541, %v933, 0.0
        %v939 = vadd.f32 %v937, %v938
        %v940 = vsel %vm541, %v934, 0.0
        %v941 = vadd.f32 %v939, %v940
        %942 = vadd.xlane.f32.xlu0 %v941
        %v943 = vpop.xlane.xlu0 %942
        %v944 = vrot.slane %v943, 4
        %v945 = vadd.f32 %v943, %v944
        %v946 = vrot.slane %v945, 2
        %v947 = vadd.f32 %v945, %v946
        %v948 = vrot.slane %v947, 1
        %v949 = vadd.f32 %v947, %v948
        %s950 = vtos %v949
        %s951 = smul.f32 %s950, 0.001953125
        %s952 = sld [smem:[#allocation5 + %s617]]
        %s953 = sadd.f32 %s951, 1e-05
        %v954 = vstv %s953
        %v955 = vrsqrt.pop %v954
        %s956 = vtos %v955
        %s957 = smul.f32 %s952, %s956
        %v958 = vstv %s957
        %v959 = vmul.f32 %v927, %v958
        %v960 = vmul.f32 %v928, %v958
        %v961 = vmul.f32 %v929, %v958
        %v962 = vmul.f32 %v930, %v958
        %s963 = sld [smem:[#allocation7 + %s617]]
        %v964 = vstv %s963
        %v965 = vadd.f32 %v959, %v964
        %v966 = vadd.f32 %v960, %v964
        %v967 = vadd.f32 %v961, %v964
        %v968 = vadd.f32 %v962, %v964
        %v969 = vmax.f32 %v965, 0.0
        %v970 = vmax.f32 %v966, 0.0
        %v971 = vmax.f32 %v967, 0.0
        %v972 = vmax.f32 %v968, 0.0
        %s973 = scalar_lea.vmem %s232, 32 [#allocation8]
        %974 = vst.msk [vmem:[%s973] sm:$0xff] %vm541, %v969
        %975 = vst.msk [vmem:[%s973 + $0x8] sm:$0xff] %vm541, %v970
        %976 = vst.msk [vmem:[%s973 + $0x10] sm:$0xff] %vm541, %v971
        %977 = vst.msk [vmem:[%s973 + $0x18] sm:$0xff] %vm541, %v972
        %s978 = scalar_lea.vmem %s238, 96
        %v979 = vld [vmem:[%s978] sm:$0xff]
        %v980 = vld [vmem:[%s978 + $0x8] sm:$0xff]
        %v981 = vld [vmem:[%s978 + $0x10] sm:$0x3]
        %v982 = vld [vmem:[%s978 + $0x18] sm:$0xff]
        %v983 = vld [vmem:[%s978 + $0x20] sm:$0xff]
        %v984 = vld [vmem:[%s978 + $0x28] sm:$0x3]
        %s985 = sadd.s32 %s241, 2
        %s986 = smul.u32 %s985, 128
        %s987 = sld [smem:[#allocation2 + %s986]]
        %v988 = vstv %s987
        %v989 = vmul.f32 %v988, %v979
        %v990 = vmul.f32 %v988, %v980
        %v991 = vmul.f32 %v988, %v982
        %v992 = vmul.f32 %v988, %v983
        %s993 = sadd.s32 %s986, 1
        %s994 = sld [smem:[#allocation2 + %s993]]
        %v995 = vstv %s994
        %v996 = vmul.f32 %v995, %v979
        %v997 = vmul.f32 %v995, %v980
        %v998 = vmul.f32 %v995, %v982
        %v999 = vmul.f32 %v995, %v983
        %1004 = vrot.lane.b32.xlu0 %v996, 127
        %v1005 = vpop.permute.xlu0 %1004
        %1006 = vrot.lane.b32.xlu0 %v997, 127
        %v1007 = vpop.permute.xlu0 %1006
        %1008 = vrot.lane.b32.xlu0 %v998, 127
        %v1009 = vpop.permute.xlu0 %1008
        %1010 = vrot.lane.b32.xlu0 %v999, 127
        %v1011 = vpop.permute.xlu0 %1010
        %v1016 = vadd.f32 %v989, %v1005
        %v1017 = vadd.f32 %v990, %v1007
        %v1018 = vadd.f32 %v991, %v1009
        %v1019 = vadd.f32 %v992, %v1011
        %s1020 = sadd.s32 %s986, 2
        %s1021 = sld [smem:[#allocation2 + %s1020]]
        %v1022 = vstv %s1021
        %v1023 = vmul.f32 %v1022, %v979
        %v1024 = vmul.f32 %v1022, %v980
        %v1025 = vmul.f32 %v1022, %v982
        %v1026 = vmul.f32 %v1022, %v983
        %1031 = vrot.lane.b32.xlu0 %v1023, 126
        %v1032 = vpop.permute.xlu0 %1031
        %1033 = vrot.lane.b32.xlu0 %v1024, 126
        %v1034 = vpop.permute.xlu0 %1033
        %1035 = vrot.lane.b32.xlu0 %v1025, 126
        %v1036 = vpop.permute.xlu0 %1035
        %1037 = vrot.lane.b32.xlu0 %v1026, 126
        %v1038 = vpop.permute.xlu0 %1037
        %v1043 = vadd.f32 %v1016, %v1032
        %v1044 = vadd.f32 %v1017, %v1034
        %v1045 = vadd.f32 %v1018, %v1036
        %v1046 = vadd.f32 %v1019, %v1038
        %s1047 = sadd.s32 %s986, 3
        %s1048 = sld [smem:[#allocation2 + %s1047]]
        %v1049 = vstv %s1048
        %v1050 = vmul.f32 %v1049, %v979
        %v1051 = vmul.f32 %v1049, %v980
        %v1052 = vmul.f32 %v1049, %v981
        %v1053 = vmul.f32 %v1049, %v982
        %v1054 = vmul.f32 %v1049, %v983
        %v1055 = vmul.f32 %v1049, %v984
        %v1062 = vrot.slane %v1050, 1
        %v1063 = vrot.slane %v1051, 1
        %v1064 = vsel %vm324, %v1062, %v1063
        %v1065 = vrot.slane %v1052, 1
        %v1066 = vsel %vm324, %v1063, %v1065
        %v1067 = vrot.slane %v1053, 1
        %v1068 = vrot.slane %v1054, 1
        %v1069 = vsel %vm324, %v1067, %v1068
        %v1070 = vrot.slane %v1055, 1
        %v1071 = vsel %vm324, %v1068, %v1070
        %v1076 = vadd.f32 %v1043, %v1064
        %v1077 = vadd.f32 %v1044, %v1066
        %v1078 = vadd.f32 %v1045, %v1069
        %v1079 = vadd.f32 %v1046, %v1071
        %s1080 = sadd.s32 %s986, 4
        %s1081 = sld [smem:[#allocation2 + %s1080]]
        %v1082 = vstv %s1081
        %v1083 = vmul.f32 %v1082, %v979
        %v1084 = vmul.f32 %v1082, %v980
        %v1085 = vmul.f32 %v1082, %v981
        %v1086 = vmul.f32 %v1082, %v982
        %v1087 = vmul.f32 %v1082, %v983
        %v1088 = vmul.f32 %v1082, %v984
        %v1095 = vrot.slane %v1083, 1
        %v1096 = vrot.slane %v1084, 1
        %v1097 = vsel %vm324, %v1095, %v1096
        %v1098 = vrot.slane %v1085, 1
        %v1099 = vsel %vm324, %v1096, %v1098
        %v1100 = vrot.slane %v1086, 1
        %v1101 = vrot.slane %v1087, 1
        %v1102 = vsel %vm324, %v1100, %v1101
        %v1103 = vrot.slane %v1088, 1
        %v1104 = vsel %vm324, %v1101, %v1103
        %1105 = vrot.lane.b32.xlu0 %v1097, 127
        %v1106 = vpop.permute.xlu0 %1105
        %1107 = vrot.lane.b32.xlu0 %v1099, 127
        %v1108 = vpop.permute.xlu0 %1107
        %1109 = vrot.lane.b32.xlu0 %v1102, 127
        %v1110 = vpop.permute.xlu0 %1109
        %1111 = vrot.lane.b32.xlu0 %v1104, 127
        %v1112 = vpop.permute.xlu0 %1111
        %v1117 = vadd.f32 %v1076, %v1106
        %v1118 = vadd.f32 %v1077, %v1108
        %v1119 = vadd.f32 %v1078, %v1110
        %v1120 = vadd.f32 %v1079, %v1112
        %s1121 = sadd.s32 %s986, 5
        %s1122 = sld [smem:[#allocation2 + %s1121]]
        %v1123 = vstv %s1122
        %v1124 = vmul.f32 %v1123, %v979
        %v1125 = vmul.f32 %v1123, %v980
        %v1126 = vmul.f32 %v1123, %v981
        %v1127 = vmul.f32 %v1123, %v982
        %v1128 = vmul.f32 %v1123, %v983
        %v1129 = vmul.f32 %v1123, %v984
        %v1136 = vrot.slane %v1124, 1
        %v1137 = vrot.slane %v1125, 1
        %v1138 = vsel %vm324, %v1136, %v1137
        %v1139 = vrot.slane %v1126, 1
        %v1140 = vsel %vm324, %v1137, %v1139
        %v1141 = vrot.slane %v1127, 1
        %v1142 = vrot.slane %v1128, 1
        %v1143 = vsel %vm324, %v1141, %v1142
        %v1144 = vrot.slane %v1129, 1
        %v1145 = vsel %vm324, %v1142, %v1144
        %1146 = vrot.lane.b32.xlu0 %v1138, 126
        %v1147 = vpop.permute.xlu0 %1146
        %1148 = vrot.lane.b32.xlu0 %v1140, 126
        %v1149 = vpop.permute.xlu0 %1148
        %1150 = vrot.lane.b32.xlu0 %v1143, 126
        %v1151 = vpop.permute.xlu0 %1150
        %1152 = vrot.lane.b32.xlu0 %v1145, 126
        %v1153 = vpop.permute.xlu0 %1152
        %v1158 = vadd.f32 %v1117, %v1147
        %v1159 = vadd.f32 %v1118, %v1149
        %v1160 = vadd.f32 %v1119, %v1151
        %v1161 = vadd.f32 %v1120, %v1153
        %s1162 = sadd.s32 %s986, 6
        %s1163 = sld [smem:[#allocation2 + %s1162]]
        %v1164 = vstv %s1163
        %v1165 = vmul.f32 %v1164, %v979
        %v1166 = vmul.f32 %v1164, %v980
        %v1167 = vmul.f32 %v1164, %v981
        %v1168 = vmul.f32 %v1164, %v982
        %v1169 = vmul.f32 %v1164, %v983
        %v1170 = vmul.f32 %v1164, %v984
        %v1177 = vrot.slane %v1165, 2
        %v1178 = vrot.slane %v1166, 2
        %v1179 = vsel %vm440, %v1177, %v1178
        %v1180 = vrot.slane %v1167, 2
        %v1181 = vsel %vm440, %v1178, %v1180
        %v1182 = vrot.slane %v1168, 2
        %v1183 = vrot.slane %v1169, 2
        %v1184 = vsel %vm440, %v1182, %v1183
        %v1185 = vrot.slane %v1170, 2
        %v1186 = vsel %vm440, %v1183, %v1185
        %v1191 = vadd.f32 %v1158, %v1179
        %v1192 = vadd.f32 %v1159, %v1181
        %v1193 = vadd.f32 %v1160, %v1184
        %v1194 = vadd.f32 %v1161, %v1186
        %s1195 = sadd.s32 %s986, 7
        %s1196 = sld [smem:[#allocation2 + %s1195]]
        %v1197 = vstv %s1196
        %v1198 = vmul.f32 %v1197, %v979
        %v1199 = vmul.f32 %v1197, %v980
        %v1200 = vmul.f32 %v1197, %v981
        %v1201 = vmul.f32 %v1197, %v982
        %v1202 = vmul.f32 %v1197, %v983
        %v1203 = vmul.f32 %v1197, %v984
        %v1210 = vrot.slane %v1198, 2
        %v1211 = vrot.slane %v1199, 2
        %v1212 = vsel %vm440, %v1210, %v1211
        %v1213 = vrot.slane %v1200, 2
        %v1214 = vsel %vm440, %v1211, %v1213
        %v1215 = vrot.slane %v1201, 2
        %v1216 = vrot.slane %v1202, 2
        %v1217 = vsel %vm440, %v1215, %v1216
        %v1218 = vrot.slane %v1203, 2
        %v1219 = vsel %vm440, %v1216, %v1218
        %1220 = vrot.lane.b32.xlu0 %v1212, 127
        %v1221 = vpop.permute.xlu0 %1220
        %1222 = vrot.lane.b32.xlu0 %v1214, 127
        %v1223 = vpop.permute.xlu0 %1222
        %1224 = vrot.lane.b32.xlu0 %v1217, 127
        %v1225 = vpop.permute.xlu0 %1224
        %1226 = vrot.lane.b32.xlu0 %v1219, 127
        %v1227 = vpop.permute.xlu0 %1226
        %v1232 = vadd.f32 %v1191, %v1221
        %v1233 = vadd.f32 %v1192, %v1223
        %v1234 = vadd.f32 %v1193, %v1225
        %v1235 = vadd.f32 %v1194, %v1227
        %s1236 = sadd.s32 %s986, 8
        %s1237 = sld [smem:[#allocation2 + %s1236]]
        %v1238 = vstv %s1237
        %v1239 = vmul.f32 %v1238, %v979
        %v1240 = vmul.f32 %v1238, %v980
        %v1241 = vmul.f32 %v1238, %v981
        %v1242 = vmul.f32 %v1238, %v982
        %v1243 = vmul.f32 %v1238, %v983
        %v1244 = vmul.f32 %v1238, %v984
        %v1251 = vrot.slane %v1239, 2
        %v1252 = vrot.slane %v1240, 2
        %v1253 = vsel %vm440, %v1251, %v1252
        %v1254 = vrot.slane %v1241, 2
        %v1255 = vsel %vm440, %v1252, %v1254
        %v1256 = vrot.slane %v1242, 2
        %v1257 = vrot.slane %v1243, 2
        %v1258 = vsel %vm440, %v1256, %v1257
        %v1259 = vrot.slane %v1244, 2
        %v1260 = vsel %vm440, %v1257, %v1259
        %1261 = vrot.lane.b32.xlu0 %v1253, 126
        %v1262 = vpop.permute.xlu0 %1261
        %1263 = vrot.lane.b32.xlu0 %v1255, 126
        %v1264 = vpop.permute.xlu0 %1263
        %1265 = vrot.lane.b32.xlu0 %v1258, 126
        %v1266 = vpop.permute.xlu0 %1265
        %1267 = vrot.lane.b32.xlu0 %v1260, 126
        %v1268 = vpop.permute.xlu0 %1267
        %v1273 = vadd.f32 %v1232, %v1262
        %v1274 = vadd.f32 %v1233, %v1264
        %v1275 = vadd.f32 %v1234, %v1266
        %v1276 = vadd.f32 %v1235, %v1268
        %v1277 = vsel %vm541, %v1273, 0.0
        %v1278 = vsel %vm541, %v1274, 0.0
        %v1279 = vadd.f32 %v1277, %v1278
        %v1280 = vsel %vm541, %v1275, 0.0
        %v1281 = vadd.f32 %v1279, %v1280
        %v1282 = vsel %vm541, %v1276, 0.0
        %v1283 = vadd.f32 %v1281, %v1282
        %1284 = vadd.xlane.f32.xlu0 %v1283
        %v1285 = vpop.xlane.xlu0 %1284
        %v1286 = vrot.slane %v1285, 4
        %v1287 = vadd.f32 %v1285, %v1286
        %v1288 = vrot.slane %v1287, 2
        %v1289 = vadd.f32 %v1287, %v1288
        %v1290 = vrot.slane %v1289, 1
        %v1291 = vadd.f32 %v1289, %v1290
        %s1292 = vtos %v1291
        %s1293 = smul.f32 %s1292, 0.001953125
        %v1294 = vstv %s1293
        %v1295 = vsub.f32 %v1273, %v1294
        %v1296 = vsub.f32 %v1274, %v1294
        %v1297 = vsub.f32 %v1275, %v1294
        %v1298 = vsub.f32 %v1276, %v1294
        %v1299 = vmul.f32 %v1295, %v1295
        %v1300 = vmul.f32 %v1296, %v1296
        %v1301 = vmul.f32 %v1297, %v1297
        %v1302 = vmul.f32 %v1298, %v1298
        %v1303 = vsel %vm541, %v1299, 0.0
        %v1304 = vsel %vm541, %v1300, 0.0
        %v1305 = vadd.f32 %v1303, %v1304
        %v1306 = vsel %vm541, %v1301, 0.0
        %v1307 = vadd.f32 %v1305, %v1306
        %v1308 = vsel %vm541, %v1302, 0.0
        %v1309 = vadd.f32 %v1307, %v1308
        %1310 = vadd.xlane.f32.xlu0 %v1309
        %v1311 = vpop.xlane.xlu0 %1310
        %v1312 = vrot.slane %v1311, 4
        %v1313 = vadd.f32 %v1311, %v1312
        %v1314 = vrot.slane %v1313, 2
        %v1315 = vadd.f32 %v1313, %v1314
        %v1316 = vrot.slane %v1315, 1
        %v1317 = vadd.f32 %v1315, %v1316
        %s1318 = vtos %v1317
        %s1319 = smul.f32 %s1318, 0.001953125
        %s1320 = sld [smem:[#allocation5 + %s985]]
        %s1321 = sadd.f32 %s1319, 1e-05
        %v1322 = vstv %s1321
        %v1323 = vrsqrt.pop %v1322
        %s1324 = vtos %v1323
        %s1325 = smul.f32 %s1320, %s1324
        %v1326 = vstv %s1325
        %v1327 = vmul.f32 %v1295, %v1326
        %v1328 = vmul.f32 %v1296, %v1326
        %v1329 = vmul.f32 %v1297, %v1326
        %v1330 = vmul.f32 %v1298, %v1326
        %s1331 = sld [smem:[#allocation7 + %s985]]
        %v1332 = vstv %s1331
        %v1333 = vadd.f32 %v1327, %v1332
        %v1334 = vadd.f32 %v1328, %v1332
        %v1335 = vadd.f32 %v1329, %v1332
        %v1336 = vadd.f32 %v1330, %v1332
        %v1337 = vmax.f32 %v1333, 0.0
        %v1338 = vmax.f32 %v1334, 0.0
        %v1339 = vmax.f32 %v1335, 0.0
        %v1340 = vmax.f32 %v1336, 0.0
        %s1341 = scalar_lea.vmem %s232, 64 [#allocation8]
        %1342 = vst.msk [vmem:[%s1341] sm:$0xff] %vm541, %v1337
        %1343 = vst.msk [vmem:[%s1341 + $0x8] sm:$0xff] %vm541, %v1338
        %1344 = vst.msk [vmem:[%s1341 + $0x10] sm:$0xff] %vm541, %v1339
        %1345 = vst.msk [vmem:[%s1341 + $0x18] sm:$0xff] %vm541, %v1340
        %s1346 = scalar_lea.vmem %s238, 144
        %v1347 = vld [vmem:[%s1346] sm:$0xff]
        %v1348 = vld [vmem:[%s1346 + $0x8] sm:$0xff]
        %v1349 = vld [vmem:[%s1346 + $0x10] sm:$0x3]
        %v1350 = vld [vmem:[%s1346 + $0x18] sm:$0xff]
        %v1351 = vld [vmem:[%s1346 + $0x20] sm:$0xff]
        %v1352 = vld [vmem:[%s1346 + $0x28] sm:$0x3]
        %s1353 = sadd.s32 %s241, 3
        %s1354 = smul.u32 %s1353, 128
        %s1355 = sld [smem:[#allocation2 + %s1354]]
        %v1356 = vstv %s1355
        %v1357 = vmul.f32 %v1356, %v1347
        %v1358 = vmul.f32 %v1356, %v1348
        %v1359 = vmul.f32 %v1356, %v1350
        %v1360 = vmul.f32 %v1356, %v1351
        %s1361 = sadd.s32 %s1354, 1
        %s1362 = sld [smem:[#allocation2 + %s1361]]
        %v1363 = vstv %s1362
        %v1364 = vmul.f32 %v1363, %v1347
        %v1365 = vmul.f32 %v1363, %v1348
        %v1366 = vmul.f32 %v1363, %v1350
        %v1367 = vmul.f32 %v1363, %v1351
        %1372 = vrot.lane.b32.xlu0 %v1364, 127
        %v1373 = vpop.permute.xlu0 %1372
        %1374 = vrot.lane.b32.xlu0 %v1365, 127
        %v1375 = vpop.permute.xlu0 %1374
        %1376 = vrot.lane.b32.xlu0 %v1366, 127
        %v1377 = vpop.permute.xlu0 %1376
        %1378 = vrot.lane.b32.xlu0 %v1367, 127
        %v1379 = vpop.permute.xlu0 %1378
        %v1384 = vadd.f32 %v1357, %v1373
        %v1385 = vadd.f32 %v1358, %v1375
        %v1386 = vadd.f32 %v1359, %v1377
        %v1387 = vadd.f32 %v1360, %v1379
        %s1388 = sadd.s32 %s1354, 2
        %s1389 = sld [smem:[#allocation2 + %s1388]]
        %v1390 = vstv %s1389
        %v1391 = vmul.f32 %v1390, %v1347
        %v1392 = vmul.f32 %v1390, %v1348
        %v1393 = vmul.f32 %v1390, %v1350
        %v1394 = vmul.f32 %v1390, %v1351
        %1399 = vrot.lane.b32.xlu0 %v1391, 126
        %v1400 = vpop.permute.xlu0 %1399
        %1401 = vrot.lane.b32.xlu0 %v1392, 126
        %v1402 = vpop.permute.xlu0 %1401
        %1403 = vrot.lane.b32.xlu0 %v1393, 126
        %v1404 = vpop.permute.xlu0 %1403
        %1405 = vrot.lane.b32.xlu0 %v1394, 126
        %v1406 = vpop.permute.xlu0 %1405
        %v1411 = vadd.f32 %v1384, %v1400
        %v1412 = vadd.f32 %v1385, %v1402
        %v1413 = vadd.f32 %v1386, %v1404
        %v1414 = vadd.f32 %v1387, %v1406
        %s1415 = sadd.s32 %s1354, 3
        %s1416 = sld [smem:[#allocation2 + %s1415]]
        %v1417 = vstv %s1416
        %v1418 = vmul.f32 %v1417, %v1347
        %v1419 = vmul.f32 %v1417, %v1348
        %v1420 = vmul.f32 %v1417, %v1349
        %v1421 = vmul.f32 %v1417, %v1350
        %v1422 = vmul.f32 %v1417, %v1351
        %v1423 = vmul.f32 %v1417, %v1352
        %v1430 = vrot.slane %v1418, 1
        %v1431 = vrot.slane %v1419, 1
        %v1432 = vsel %vm324, %v1430, %v1431
        %v1433 = vrot.slane %v1420, 1
        %v1434 = vsel %vm324, %v1431, %v1433
        %v1435 = vrot.slane %v1421, 1
        %v1436 = vrot.slane %v1422, 1
        %v1437 = vsel %vm324, %v1435, %v1436
        %v1438 = vrot.slane %v1423, 1
        %v1439 = vsel %vm324, %v1436, %v1438
        %v1444 = vadd.f32 %v1411, %v1432
        %v1445 = vadd.f32 %v1412, %v1434
        %v1446 = vadd.f32 %v1413, %v1437
        %v1447 = vadd.f32 %v1414, %v1439
        %s1448 = sadd.s32 %s1354, 4
        %s1449 = sld [smem:[#allocation2 + %s1448]]
        %v1450 = vstv %s1449
        %v1451 = vmul.f32 %v1450, %v1347
        %v1452 = vmul.f32 %v1450, %v1348
        %v1453 = vmul.f32 %v1450, %v1349
        %v1454 = vmul.f32 %v1450, %v1350
        %v1455 = vmul.f32 %v1450, %v1351
        %v1456 = vmul.f32 %v1450, %v1352
        %v1463 = vrot.slane %v1451, 1
        %v1464 = vrot.slane %v1452, 1
        %v1465 = vsel %vm324, %v1463, %v1464
        %v1466 = vrot.slane %v1453, 1
        %v1467 = vsel %vm324, %v1464, %v1466
        %v1468 = vrot.slane %v1454, 1
        %v1469 = vrot.slane %v1455, 1
        %v1470 = vsel %vm324, %v1468, %v1469
        %v1471 = vrot.slane %v1456, 1
        %v1472 = vsel %vm324, %v1469, %v1471
        %1473 = vrot.lane.b32.xlu0 %v1465, 127
        %v1474 = vpop.permute.xlu0 %1473
        %1475 = vrot.lane.b32.xlu0 %v1467, 127
        %v1476 = vpop.permute.xlu0 %1475
        %1477 = vrot.lane.b32.xlu0 %v1470, 127
        %v1478 = vpop.permute.xlu0 %1477
        %1479 = vrot.lane.b32.xlu0 %v1472, 127
        %v1480 = vpop.permute.xlu0 %1479
        %v1485 = vadd.f32 %v1444, %v1474
        %v1486 = vadd.f32 %v1445, %v1476
        %v1487 = vadd.f32 %v1446, %v1478
        %v1488 = vadd.f32 %v1447, %v1480
        %s1489 = sadd.s32 %s1354, 5
        %s1490 = sld [smem:[#allocation2 + %s1489]]
        %v1491 = vstv %s1490
        %v1492 = vmul.f32 %v1491, %v1347
        %v1493 = vmul.f32 %v1491, %v1348
        %v1494 = vmul.f32 %v1491, %v1349
        %v1495 = vmul.f32 %v1491, %v1350
        %v1496 = vmul.f32 %v1491, %v1351
        %v1497 = vmul.f32 %v1491, %v1352
        %v1504 = vrot.slane %v1492, 1
        %v1505 = vrot.slane %v1493, 1
        %v1506 = vsel %vm324, %v1504, %v1505
        %v1507 = vrot.slane %v1494, 1
        %v1508 = vsel %vm324, %v1505, %v1507
        %v1509 = vrot.slane %v1495, 1
        %v1510 = vrot.slane %v1496, 1
        %v1511 = vsel %vm324, %v1509, %v1510
        %v1512 = vrot.slane %v1497, 1
        %v1513 = vsel %vm324, %v1510, %v1512
        %1514 = vrot.lane.b32.xlu0 %v1506, 126
        %v1515 = vpop.permute.xlu0 %1514
        %1516 = vrot.lane.b32.xlu0 %v1508, 126
        %v1517 = vpop.permute.xlu0 %1516
        %1518 = vrot.lane.b32.xlu0 %v1511, 126
        %v1519 = vpop.permute.xlu0 %1518
        %1520 = vrot.lane.b32.xlu0 %v1513, 126
        %v1521 = vpop.permute.xlu0 %1520
        %v1526 = vadd.f32 %v1485, %v1515
        %v1527 = vadd.f32 %v1486, %v1517
        %v1528 = vadd.f32 %v1487, %v1519
        %v1529 = vadd.f32 %v1488, %v1521
        %s1530 = sadd.s32 %s1354, 6
        %s1531 = sld [smem:[#allocation2 + %s1530]]
        %v1532 = vstv %s1531
        %v1533 = vmul.f32 %v1532, %v1347
        %v1534 = vmul.f32 %v1532, %v1348
        %v1535 = vmul.f32 %v1532, %v1349
        %v1536 = vmul.f32 %v1532, %v1350
        %v1537 = vmul.f32 %v1532, %v1351
        %v1538 = vmul.f32 %v1532, %v1352
        %v1545 = vrot.slane %v1533, 2
        %v1546 = vrot.slane %v1534, 2
        %v1547 = vsel %vm440, %v1545, %v1546
        %v1548 = vrot.slane %v1535, 2
        %v1549 = vsel %vm440, %v1546, %v1548
        %v1550 = vrot.slane %v1536, 2
        %v1551 = vrot.slane %v1537, 2
        %v1552 = vsel %vm440, %v1550, %v1551
        %v1553 = vrot.slane %v1538, 2
        %v1554 = vsel %vm440, %v1551, %v1553
        %v1559 = vadd.f32 %v1526, %v1547
        %v1560 = vadd.f32 %v1527, %v1549
        %v1561 = vadd.f32 %v1528, %v1552
        %v1562 = vadd.f32 %v1529, %v1554
        %s1563 = sadd.s32 %s1354, 7
        %s1564 = sld [smem:[#allocation2 + %s1563]]
        %v1565 = vstv %s1564
        %v1566 = vmul.f32 %v1565, %v1347
        %v1567 = vmul.f32 %v1565, %v1348
        %v1568 = vmul.f32 %v1565, %v1349
        %v1569 = vmul.f32 %v1565, %v1350
        %v1570 = vmul.f32 %v1565, %v1351
        %v1571 = vmul.f32 %v1565, %v1352
        %v1578 = vrot.slane %v1566, 2
        %v1579 = vrot.slane %v1567, 2
        %v1580 = vsel %vm440, %v1578, %v1579
        %v1581 = vrot.slane %v1568, 2
        %v1582 = vsel %vm440, %v1579, %v1581
        %v1583 = vrot.slane %v1569, 2
        %v1584 = vrot.slane %v1570, 2
        %v1585 = vsel %vm440, %v1583, %v1584
        %v1586 = vrot.slane %v1571, 2
        %v1587 = vsel %vm440, %v1584, %v1586
        %1588 = vrot.lane.b32.xlu0 %v1580, 127
        %v1589 = vpop.permute.xlu0 %1588
        %1590 = vrot.lane.b32.xlu0 %v1582, 127
        %v1591 = vpop.permute.xlu0 %1590
        %1592 = vrot.lane.b32.xlu0 %v1585, 127
        %v1593 = vpop.permute.xlu0 %1592
        %1594 = vrot.lane.b32.xlu0 %v1587, 127
        %v1595 = vpop.permute.xlu0 %1594
        %v1600 = vadd.f32 %v1559, %v1589
        %v1601 = vadd.f32 %v1560, %v1591
        %v1602 = vadd.f32 %v1561, %v1593
        %v1603 = vadd.f32 %v1562, %v1595
        %s1604 = sadd.s32 %s1354, 8
        %s1605 = sld [smem:[#allocation2 + %s1604]]
        %v1606 = vstv %s1605
        %v1607 = vmul.f32 %v1606, %v1347
        %v1608 = vmul.f32 %v1606, %v1348
        %v1609 = vmul.f32 %v1606, %v1349
        %v1610 = vmul.f32 %v1606, %v1350
        %v1611 = vmul.f32 %v1606, %v1351
        %v1612 = vmul.f32 %v1606, %v1352
        %v1619 = vrot.slane %v1607, 2
        %v1620 = vrot.slane %v1608, 2
        %v1621 = vsel %vm440, %v1619, %v1620
        %v1622 = vrot.slane %v1609, 2
        %v1623 = vsel %vm440, %v1620, %v1622
        %v1624 = vrot.slane %v1610, 2
        %v1625 = vrot.slane %v1611, 2
        %v1626 = vsel %vm440, %v1624, %v1625
        %v1627 = vrot.slane %v1612, 2
        %v1628 = vsel %vm440, %v1625, %v1627
        %1629 = vrot.lane.b32.xlu0 %v1621, 126
        %v1630 = vpop.permute.xlu0 %1629
        %1631 = vrot.lane.b32.xlu0 %v1623, 126
        %v1632 = vpop.permute.xlu0 %1631
        %1633 = vrot.lane.b32.xlu0 %v1626, 126
        %v1634 = vpop.permute.xlu0 %1633
        %1635 = vrot.lane.b32.xlu0 %v1628, 126
        %v1636 = vpop.permute.xlu0 %1635
        %v1641 = vadd.f32 %v1600, %v1630
        %v1642 = vadd.f32 %v1601, %v1632
        %v1643 = vadd.f32 %v1602, %v1634
        %v1644 = vadd.f32 %v1603, %v1636
        %v1645 = vsel %vm541, %v1641, 0.0
        %v1646 = vsel %vm541, %v1642, 0.0
        %v1647 = vadd.f32 %v1645, %v1646
        %v1648 = vsel %vm541, %v1643, 0.0
        %v1649 = vadd.f32 %v1647, %v1648
        %v1650 = vsel %vm541, %v1644, 0.0
        %v1651 = vadd.f32 %v1649, %v1650
        %1652 = vadd.xlane.f32.xlu0 %v1651
        %v1653 = vpop.xlane.xlu0 %1652
        %v1654 = vrot.slane %v1653, 4
        %v1655 = vadd.f32 %v1653, %v1654
        %v1656 = vrot.slane %v1655, 2
        %v1657 = vadd.f32 %v1655, %v1656
        %v1658 = vrot.slane %v1657, 1
        %v1659 = vadd.f32 %v1657, %v1658
        %s1660 = vtos %v1659
        %s1661 = smul.f32 %s1660, 0.001953125
        %v1662 = vstv %s1661
        %v1663 = vsub.f32 %v1641, %v1662
        %v1664 = vsub.f32 %v1642, %v1662
        %v1665 = vsub.f32 %v1643, %v1662
        %v1666 = vsub.f32 %v1644, %v1662
        %v1667 = vmul.f32 %v1663, %v1663
        %v1668 = vmul.f32 %v1664, %v1664
        %v1669 = vmul.f32 %v1665, %v1665
        %v1670 = vmul.f32 %v1666, %v1666
        %v1671 = vsel %vm541, %v1667, 0.0
        %v1672 = vsel %vm541, %v1668, 0.0
        %v1673 = vadd.f32 %v1671, %v1672
        %v1674 = vsel %vm541, %v1669, 0.0
        %v1675 = vadd.f32 %v1673, %v1674
        %v1676 = vsel %vm541, %v1670, 0.0
        %v1677 = vadd.f32 %v1675, %v1676
        %1678 = vadd.xlane.f32.xlu0 %v1677
        %v1679 = vpop.xlane.xlu0 %1678
        %v1680 = vrot.slane %v1679, 4
        %v1681 = vadd.f32 %v1679, %v1680
        %v1682 = vrot.slane %v1681, 2
        %v1683 = vadd.f32 %v1681, %v1682
        %v1684 = vrot.slane %v1683, 1
        %v1685 = vadd.f32 %v1683, %v1684
        %s1686 = vtos %v1685
        %s1687 = smul.f32 %s1686, 0.001953125
        %s1688 = sld [smem:[#allocation5 + %s1353]]
        %s1689 = sadd.f32 %s1687, 1e-05
        %v1690 = vstv %s1689
        %v1691 = vrsqrt.pop %v1690
        %s1692 = vtos %v1691
        %s1693 = smul.f32 %s1688, %s1692
        %v1694 = vstv %s1693
        %v1695 = vmul.f32 %v1663, %v1694
        %v1696 = vmul.f32 %v1664, %v1694
        %v1697 = vmul.f32 %v1665, %v1694
        %v1698 = vmul.f32 %v1666, %v1694
        %s1699 = sld [smem:[#allocation7 + %s1353]]
        %v1700 = vstv %s1699
        %v1701 = vadd.f32 %v1695, %v1700
        %v1702 = vadd.f32 %v1696, %v1700
        %v1703 = vadd.f32 %v1697, %v1700
        %v1704 = vadd.f32 %v1698, %v1700
        %v1705 = vmax.f32 %v1701, 0.0
        %v1706 = vmax.f32 %v1702, 0.0
        %v1707 = vmax.f32 %v1703, 0.0
        %v1708 = vmax.f32 %v1704, 0.0
        %s1709 = scalar_lea.vmem %s232, 96 [#allocation8]
        %1710 = vst.msk [vmem:[%s1709] sm:$0xff] %vm541, %v1705
        %1711 = vst.msk [vmem:[%s1709 + $0x8] sm:$0xff] %vm541, %v1706
        %1712 = vst.msk [vmem:[%s1709 + $0x10] sm:$0xff] %vm541, %v1707
        %1713 = vst.msk [vmem:[%s1709 + $0x18] sm:$0xff] %vm541, %v1708
        %s1714 = sand.u32 %s117, 1
        %s1715 = scalar_lea.sflag [#allocation3], %s1714
        %s1716 = sand.u32 %s117, 1
        %s1717 = smul.addr %s1716, 128
        %s1718 = scalar_lea.vmem [#allocation8], %s1717
        // Predicated region
        $region49: #{tpu_custom_call.1} parent=35 // pred_check
          %p1719 = pneg %p127
        $region50: #{tpu_custom_call.1} parent=35 // pred_check_branch
          %1721 = sbr.rel (%p1719) target = $region52
        $region51: #{tpu_custom_call.1} parent=35 // pred_region
          %s1722 = smul.u32 4, %s20
          %s1724 = ssub.s32 2048, 2048
          %1725 = vsyncadd %s1715, %s1724
          %s1726 = smul.addr %s1722, 4
          %s1727 = smul.addr %s1726, 128
          %s1728 = scalar_lea.hbm %s4, %s1727
          %s1729 = sshll.u32 %s1718, 4
          %s1730 = int_to_ptr.vmem [resolvable:$true] %s1729
          %1735 = dma.vmem_to_hbm [thread:$0]  %s1730, 2048, %s1728, %s1715, 128, 128, 8
        $region52: #{tpu_custom_call.1} parent=35 // pred_fallthru
          _
      $region36: #{tpu_custom_call.1} parent=5 // pred_fallthru
        _
      %p1736 = scmp.le.s32.totalorder 2, %s15
      // Predicated region
      $region53: #{tpu_custom_call.1} parent=5 // pred_check
        %p1737 = pneg %p1736
      $region54: #{tpu_custom_call.1} parent=5 // pred_check_branch
        %1739 = sbr.rel (%p1737) target = $region56
      $region55: #{tpu_custom_call.1} parent=5 // pred_region
        %s1740 = ssub.s32 %s15, 2
        // Predicated region
        $region57: #{tpu_custom_call.1} parent=55 // pred_check
          %p1741 = pneg %p133
        $region58: #{tpu_custom_call.1} parent=55 // pred_check_branch
          %1743 = sbr.rel (%p1741) target = $region60
        $region59: #{tpu_custom_call.1} parent=55 // pred_region
          %s1744 = sand.u32 %s118, 1
          %s1745 = scalar_lea.sflag [#allocation3], %s1744
          %s1746 = sand.u32 %s118, 1
          %s1747 = smul.addr %s1746, 128
          %s1748 = scalar_lea.vmem [#allocation8], %s1747
          %1749 = dma.done %s1745, 2048
        $region60: #{tpu_custom_call.1} parent=55 // pred_fallthru
          _
      $region56: #{tpu_custom_call.1} parent=5 // pred_fallthru
        _
    $region6: #{tpu_custom_call.1} parent=1 // loop_footer
      %s19 = sadd.s32 1, %s15
    $region7: #{tpu_custom_call.1} parent=1 // loop_footer_branch
      %14 = sbr.rel target = $region3
    $region8: #{tpu_custom_call.1} parent=1 // loop_exit
      _
    %1750 = vsyncpa [#allocation3], 1
    %s1751 = scalar_lea.sflag [#allocation3], 1
    %1752 = vsyncpa %s1751, 1
    %1753 = vsyncpa [#allocation4], 1
    %s1754 = scalar_lea.sflag [#allocation4], 1
    %1755 = vsyncpa %s1754, 1
    %1756 = vsyncpa [#allocation6], 1

</llo_original>
